<compile_context>
chip_gen: v7x
topology: tpu7x:2x2x1
jax: 0.10.0
libtpu: 0.0.40
codegen_flags: <defaults>
</compile_context>

<pallas_src>
import jax
import jax.numpy as jnp
from jax.experimental import pallas as pl
from jax.experimental.pallas import tpu as pltpu


# ------------------------------ fused kernel -------------------------------

def _make_bottleneck_kernel(H, W, Cmid):
    """Kernel closure over the static spatial size (H, W) and mid channels."""

    def kernel(x_ref, w1_ref, w2_ref, w3_ref, b1_ref, b2_ref, b3_ref,
               o_ref, xp_ref, xs_ref):
        # x_ref:  (1, H*W, Cin)       activations for one batch element
        # w1_ref: (Cin, Cmid)         1x1 conv as matmul (BN1 scale folded in)
        # w2_ref: (3, 3*Cmid, Cmid)   3x3 conv, kh-major, (kw,cin) flattened (BN2 scale folded in)
        # w3_ref: (Cmid, Cout)        1x1 conv as matmul (BN3 scale folded in)
        # b*_ref: (1, C)              folded BN biases (f32)
        # o_ref:  (1, H*W, Cout)
        # xp_ref: (H+2, W+2, Cmid)    VMEM scratch: zero-padded conv1 output
        # xs_ref: (H+2, W, 3*Cmid)    VMEM scratch: 3 width-shifted slabs (partial im2col)
        x = x_ref[0]                                            # (H*W, Cin)

        # ---- conv1 (1x1, scale folded) + bias + ReLU -> padded VMEM scratch ----
        a1 = jnp.dot(x, w1_ref[...], preferred_element_type=jnp.float32)
        a1 = jnp.maximum(a1 + b1_ref[...], 0.0)                 # (H*W, Cmid) f32

        # Zero ONLY the halo border; the interior is fully overwritten below.
        # (Not gated on program_id==0: under megacore "parallel" sharding one
        #  core never executes program 0.)
        zrow = jnp.zeros((1, W + 2, Cmid), xp_ref.dtype)
        zcol = jnp.zeros((H + 2, 1, Cmid), xp_ref.dtype)
        xp_ref[0:1] = zrow
        xp_ref[H + 1:H + 2] = zrow
        xp_ref[:, 0:1, :] = zcol
        xp_ref[:, W + 1:W + 2, :] = zcol
        xp_ref[pl.ds(1, H), pl.ds(1, W), :] = (
            a1.reshape(H, W, Cmid).astype(xp_ref.dtype))

        # ---- conv2 (3x3, stride=1, pad=1) + bias + ReLU ----
        # Width (sublane-axis) shifts are done ONCE: the three shifted slabs are
        # lane-concatenated and stored with a single aligned full-scratch store.
        # conv2 is then 3 matmuls with K = 3*Cmid (one per kh), accumulated in a
        # register-carried value (no VMEM read-modify-write accumulator).
        xs_ref[...] = jnp.concatenate(
            [xp_ref[:, kw:kw + W, :] for kw in range(3)], axis=-1)
        acc = jnp.dot(xs_ref[0:H].reshape(H * W, 3 * Cmid), w2_ref[0],
                      preferred_element_type=jnp.float32)
        acc = acc + jnp.dot(xs_ref[1:1 + H].reshape(H * W, 3 * Cmid), w2_ref[1],
                            preferred_element_type=jnp.float32)
        acc = acc + jnp.dot(xs_ref[2:2 + H].reshape(H * W, 3 * Cmid), w2_ref[2],
                            preferred_element_type=jnp.float32)
        a2 = jnp.maximum(acc + b2_ref[...], 0.0)                # (H*W, Cmid) f32

        # ---- conv3 (1x1, scale folded) + bias + residual add + ReLU ----
        # TODO(synk): for tighter fp32 parity the residual could be fed as a
        # separate f32 input; here x (compute dtype) is upcast for the add.
        y = jnp.dot(a2.astype(w3_ref.dtype), w3_ref[...],
                    preferred_element_type=jnp.float32)
        y = y + b3_ref[...] + x.astype(jnp.float32)
        o_ref[0] = jnp.maximum(y, 0.0).astype(o_ref.dtype)

    return kernel


# ------------------------------ wrappers ----------------------------------

def _fold_bn(bn, eps=1e-5):
    gamma, beta, mean, var = bn
    s = gamma / jnp.sqrt(var + eps)
    b = beta - mean * s
    return s.reshape(1, -1).astype(jnp.float32), b.reshape(1, -1).astype(jnp.float32)


def _vmem_limit_bytes(H, W, Cin, Cmid, Cout, compute_dtype):
    """Accurate scoped-VMEM budget for this kernel (no blanket fudge factor),
    capped at 56 MiB so the same code leaves headroom on v7x (64 MiB VMEM)."""
    item = jnp.dtype(compute_dtype).itemsize
    act = 2 * H * W * (Cin + Cout) * item                              # double-buffered x / out blocks
    wts = 2 * ((Cin * Cmid + 9 * Cmid * Cmid + Cmid * Cout) * item     # weights (default double-buffered)
               + (2 * Cmid + Cout) * 4)                                # f32 biases
    scr = ((H + 2) * (W + 2) * Cmid + (H + 2) * W * 3 * Cmid) * item   # padded + shifted-slab scratch
    est = act + wts + scr
    return int(min(56 * 1024 * 1024, est + 8 * 1024 * 1024))


def bottleneck_forward_nhwc(x_nhwc, w1, w2, w3, bn1, bn2, bn3,
                            *, compute_dtype=jnp.bfloat16):
    """Fused Bottleneck forward in NHWC. x_nhwc: (N, H, W, Cin), Cin == planes*4.

    compute_dtype=bf16 (default on ALL TPU generations): bf16 matmul operands and
    bf16 HBM traffic for x/out, f32 MXU accumulation, f32 bias/residual/ReLU.
    Pass jnp.float32 for strict fp32 parity.
    """
    N, H, W, Cin = x_nhwc.shape
    planes = w1.shape[0]
    Cout = w3.shape[0]
    if Cout != Cin:
        raise NotImplementedError("stride=1 / downsample=None path requires Cin == Cout")

    s1, b1 = _fold_bn(bn1)
    s2, b2 = _fold_bn(bn2)
    s3, b3 = _fold_bn(bn3)

    # BN scales folded into conv-weight output channels (trace time); cast to the
    # MXU compute dtype at the kernel boundary.
    w1s = (jnp.transpose(w1[:, :, 0, 0], (1, 0)) * s1).astype(compute_dtype)      # (Cin, planes)
    w2s = jnp.transpose(w2, (2, 3, 1, 0)) * s2.reshape(1, 1, 1, -1)               # (kh, kw, cin, cout)
    w2s = w2s.reshape(3, 3 * planes, planes).astype(compute_dtype)                # (3, 3*planes, planes)
    w3s = (jnp.transpose(w3[:, :, 0, 0], (1, 0)) * s3).astype(compute_dtype)      # (planes, Cout)

    # Metadata-only reshape: (N, H, W, C) -> (N, H*W, C).
    xf = x_nhwc.reshape(N, H * W, Cin).astype(compute_dtype)

    item = jnp.dtype(compute_dtype).itemsize
    flops = 2 * N * H * W * (Cin * planes + 9 * planes * planes + planes * Cout)
    bytes_accessed = (item * N * H * W * (Cin + Cout)
                      + item * (Cin * planes + 9 * planes * planes + planes * Cout)
                      + 4 * (2 * planes + Cout))

    kernel = _make_bottleneck_kernel(H, W, planes)

    out = pl.pallas_call(
        kernel,
        out_shape=jax.ShapeDtypeStruct((N, H * W, Cout), compute_dtype),
        grid_spec=pltpu.PrefetchScalarGridSpec(
            num_scalar_prefetch=0,
            grid=(N,),                                                # >=2 for megacore sharding
            in_specs=[
                pl.BlockSpec((1, H * W, Cin), lambda n: (n, 0, 0)),          # x (pipelined)
                pl.BlockSpec((Cin, planes), lambda n: (0, 0)),               # w1 (resident)
                pl.BlockSpec((3, 3 * planes, planes), lambda n: (0, 0, 0)),  # w2 (resident)
                pl.BlockSpec((planes, Cout), lambda n: (0, 0)),              # w3 (resident)
                pl.BlockSpec((1, planes), lambda n: (0, 0)),                 # b1
                pl.BlockSpec((1, planes), lambda n: (0, 0)),                 # b2
                pl.BlockSpec((1, Cout), lambda n: (0, 0)),                   # b3
            ],
            out_specs=pl.BlockSpec((1, H * W, Cout), lambda n: (n, 0, 0)),
            scratch_shapes=[
                pltpu.VMEM((H + 2, W + 2, planes), compute_dtype),   # padded conv1 output
                pltpu.VMEM((H + 2, W, 3 * planes), compute_dtype),   # width-shifted slabs
            ],
        ),
        compiler_params=pltpu.CompilerParams(
            dimension_semantics=("parallel",),
            vmem_limit_bytes=_vmem_limit_bytes(H, W, Cin, planes, Cout, compute_dtype),
        ),
        cost_estimate=pl.CostEstimate(flops=flops, transcendentals=0,
                                      bytes_accessed=int(bytes_accessed)),
    )(xf, w1s, w2s, w3s, b1, b2, b3)

    return out.reshape(N, H, W, Cout)


def bottleneck_forward(x_tuple, w1, w2, w3, bn1, bn2, bn3, *, compute_dtype=jnp.bfloat16):
    """PyTorch-parity adapter: x_tuple = [x (NCHW), w_arr] -> [out (NCHW), w_arr].

    The NCHW<->NHWC transposes exist only for parity with the PyTorch module;
    at the model level prefer bottleneck_forward_nhwc end-to-end.
    """
    x, w_arr = x_tuple[0], x_tuple[1]
    x_nhwc = jnp.transpose(x, (0, 2, 3, 1))
    out_nhwc = bottleneck_forward_nhwc(x_nhwc, w1, w2, w3, bn1, bn2, bn3,
                                       compute_dtype=compute_dtype)
    out = jnp.transpose(out_nhwc, (0, 3, 1, 2))
    return [out, w_arr]


# --------------------------- pure-JAX reference ----------------------------

def _reference(x, w1, w2, w3, bn1, bn2, bn3, eps=1e-5):
    def bn(y, p):
        g, b, m, v = p
        inv = 1.0 / jnp.sqrt(v + eps)
        return (y - m[None, :, None, None]) * inv[None, :, None, None] \
               * g[None, :, None, None] + b[None, :, None, None]

    def conv(y, w, pad):
        return jax.lax.conv_general_dilated(
            y, w, (1, 1), [(pad, pad), (pad, pad)],
            dimension_numbers=("NCHW", "OIHW", "NCHW"),
            precision=jax.lax.Precision.HIGHEST)

    out = jax.nn.relu(bn(conv(x, w1, 0), bn1))
    out = jax.nn.relu(bn(conv(out, w2, 1), bn2))
    out = bn(conv(out, w3, 0), bn3)
    return jax.nn.relu(out + x)


# --------------------------------- main ------------------------------------

if __name__ == "__main__":
    key = jax.random.PRNGKey(0)
    ks = jax.random.split(key, 8)

    # Small but ResNet-shaped: planes=32 -> Cout = inplanes = 128 (lane-dense
    # output channels).  Real layers (planes>=64) fill the MXU K dim better
    # since conv2 runs with K = 3*planes here.
    N, H, W = 2, 16, 16
    planes = 32
    expansion = 4
    inplanes = planes * expansion   # 128: downsample=None, stride=1 => residual matches

    x = jax.random.normal(ks[0], (N, inplanes, H, W), jnp.float32)

    w1 = 0.1 * jax.random.normal(ks[1], (planes, inplanes, 1, 1), jnp.float32)
    w2 = 0.1 * jax.random.normal(ks[2], (planes, planes, 3, 3), jnp.float32)
    w3 = 0.1 * jax.random.normal(ks[3], (planes * expansion, planes, 1, 1), jnp.float32)

    def bn_params(k, c):
        k1, k2, k3, k4 = jax.random.split(k, 4)
        gamma = 1.0 + 0.1 * jax.random.normal(k1, (c,), jnp.float32)
        beta = 0.1 * jax.random.normal(k2, (c,), jnp.float32)
        mean = 0.1 * jax.random.normal(k3, (c,), jnp.float32)
        var = jnp.abs(jax.random.normal(k4, (c,), jnp.float32)) + 0.5
        return gamma, beta, mean, var

    bn1 = bn_params(ks[4], planes)
    bn2 = bn_params(ks[5], planes)
    bn3 = bn_params(ks[6], planes * expansion)

    ref = _reference(x, w1, w2, w3, bn1, bn2, bn3)

    # f32 compute path (strict parity check).
    out, w_arr = bottleneck_forward([x, []], w1, w2, w3, bn1, bn2, bn3,
                                    compute_dtype=jnp.float32)
    out = jax.block_until_ready(out)
    assert out.shape == (N, inplanes, H, W)
    assert jnp.allclose(out, ref, rtol=2e-3, atol=2e-3), \
        f"f32 max err {jnp.max(jnp.abs(out - ref))}"

    # Default bf16 path (bf16 operands / HBM traffic, f32 accumulation).
    out_bf, _ = bottleneck_forward([x, []], w1, w2, w3, bn1, bn2, bn3)
    out_bf = jax.block_until_ready(out_bf).astype(jnp.float32)
    assert jnp.allclose(out_bf, ref, rtol=1e-1, atol=1e-1), \
        f"bf16 max err {jnp.max(jnp.abs(out_bf - ref))}"

    print("KERNEL_OK")
</pallas_src>

<mosaic_0001>
module attributes {stable_mosaic.version = 11 : i64} {
  func.func @kernel(%arg0: i32, %arg1: memref<1x256x128xf32, #tpu.memory_space<vmem>>, %arg2: memref<128x32xf32, #tpu.memory_space<vmem>>, %arg3: memref<3x96x32xf32, #tpu.memory_space<vmem>>, %arg4: memref<32x128xf32, #tpu.memory_space<vmem>>, %arg5: memref<1x32xf32, #tpu.memory_space<vmem>>, %arg6: memref<1x32xf32, #tpu.memory_space<vmem>>, %arg7: memref<1x128xf32, #tpu.memory_space<vmem>>, %arg8: memref<1x256x128xf32, #tpu.memory_space<vmem>>, %arg9: memref<18x18x32xf32, #tpu.memory_space<vmem>>, %arg10: memref<18x16x96xf32, #tpu.memory_space<vmem>>) attributes {dimension_semantics = [#tpu.dimension_semantics<parallel>], iteration_bounds = array<i64: 2>, scalar_prefetch = 0 : i64, scratch_operands = 2 : i64, tpu.core_type = #tpu.core_type<tc>, window_params = [{transform_indices = @transform_0, window_bounds = array<i64: 1, 256, 128>}, {pipeline_mode = #tpu.pipeline_mode<synchronous>, transform_indices = @transform_1, window_bounds = array<i64: 128, 32>}, {pipeline_mode = #tpu.pipeline_mode<synchronous>, transform_indices = @transform_2, window_bounds = array<i64: 3, 96, 32>}, {pipeline_mode = #tpu.pipeline_mode<synchronous>, transform_indices = @transform_3, window_bounds = array<i64: 32, 128>}, {pipeline_mode = #tpu.pipeline_mode<synchronous>, transform_indices = @transform_4, window_bounds = array<i64: 1, 32>}, {pipeline_mode = #tpu.pipeline_mode<synchronous>, transform_indices = @transform_5, window_bounds = array<i64: 1, 32>}, {pipeline_mode = #tpu.pipeline_mode<synchronous>, transform_indices = @transform_6, window_bounds = array<i64: 1, 128>}, {transform_indices = @transform_7, window_bounds = array<i64: 1, 256, 128>}]} {
    %c0 = arith.constant 0 : index
    %c0_0 = arith.constant 0 : index
    %c0_1 = arith.constant 0 : index
    %0 = vector.load %arg1[%c0, %c0_0, %c0_1] : memref<1x256x128xf32, #tpu.memory_space<vmem>>, vector<1x256x128xf32>
    %1 = vector.shape_cast %0 : vector<1x256x128xf32> to vector<256x128xf32>
    %c0_2 = arith.constant 0 : index
    %c0_3 = arith.constant 0 : index
    %2 = vector.load %arg2[%c0_2, %c0_3] : memref<128x32xf32, #tpu.memory_space<vmem>>, vector<128x32xf32>
    %cst = arith.constant dense<0.000000e+00> : vector<256x32xf32>
    %3 = tpu.matmul %1, %2, %cst {dimension_numbers = #tpu.dot_dimension_numbers<[1], [0], [0], [1], [0, 0, 1, 1], [], []>} : vector<256x128xf32>, vector<128x32xf32>, vector<256x32xf32> -> vector<256x32xf32>
    %c0_4 = arith.constant 0 : index
    %c0_5 = arith.constant 0 : index
    %4 = vector.load %arg5[%c0_4, %c0_5] : memref<1x32xf32, #tpu.memory_space<vmem>>, vector<1x32xf32>
    %5 = vector.broadcast %4 : vector<1x32xf32> to vector<256x32xf32>
    %6 = arith.addf %3, %5 : vector<256x32xf32>
    %cst_6 = arith.constant 0.000000e+00 : f32
    %7 = vector.broadcast %cst_6 : f32 to vector<256x32xf32>
    %8 = arith.maximumf %6, %7 : vector<256x32xf32>
    %cst_7 = arith.constant 0.000000e+00 : f32
    %9 = vector.broadcast %cst_7 : f32 to vector<1x18x32xf32>
    %cst_8 = arith.constant 0.000000e+00 : f32
    %10 = vector.broadcast %cst_8 : f32 to vector<18x1x32xf32>
    %c0_9 = arith.constant 0 : index
    %c0_10 = arith.constant 0 : index
    %c0_11 = arith.constant 0 : index
    %11 = vector.load %arg9[%c0_9, %c0_10, %c0_11] : memref<18x18x32xf32, #tpu.memory_space<vmem>>, vector<1x18x32xf32>
    tpu.vector_store %arg9[%c0_9, %c0_10, %c0_11], %9 {strides = array<i32>} : memref<18x18x32xf32, #tpu.memory_space<vmem>>, vector<1x18x32xf32>,
    %c17 = arith.constant 17 : index
    %c0_12 = arith.constant 0 : index
    %c0_13 = arith.constant 0 : index
    %12 = vector.load %arg9[%c17, %c0_12, %c0_13] : memref<18x18x32xf32, #tpu.memory_space<vmem>>, vector<1x18x32xf32>
    tpu.vector_store %arg9[%c17, %c0_12, %c0_13], %9 {strides = array<i32>} : memref<18x18x32xf32, #tpu.memory_space<vmem>>, vector<1x18x32xf32>,
    %c0_14 = arith.constant 0 : index
    %c0_15 = arith.constant 0 : index
    %c0_16 = arith.constant 0 : index
    %13 = vector.load %arg9[%c0_14, %c0_15, %c0_16] : memref<18x18x32xf32, #tpu.memory_space<vmem>>, vector<18x1x32xf32>
    tpu.vector_store %arg9[%c0_14, %c0_15, %c0_16], %10 {strides = array<i32>} : memref<18x18x32xf32, #tpu.memory_space<vmem>>, vector<18x1x32xf32>,
    %c0_17 = arith.constant 0 : index
    %c17_18 = arith.constant 17 : index
    %c0_19 = arith.constant 0 : index
    %14 = vector.load %arg9[%c0_17, %c17_18, %c0_19] : memref<18x18x32xf32, #tpu.memory_space<vmem>>, vector<18x1x32xf32>
    tpu.vector_store %arg9[%c0_17, %c17_18, %c0_19], %10 {strides = array<i32>} : memref<18x18x32xf32, #tpu.memory_space<vmem>>, vector<18x1x32xf32>,
    %15 = vector.shape_cast %8 : vector<256x32xf32> to vector<16x16x32xf32>
    %c1 = arith.constant 1 : index
    %c1_20 = arith.constant 1 : index
    %c0_21 = arith.constant 0 : index
    %16 = vector.load %arg9[%c1, %c1_20, %c0_21] : memref<18x18x32xf32, #tpu.memory_space<vmem>>, vector<16x16x32xf32>
    tpu.vector_store %arg9[%c1, %c1_20, %c0_21], %15 {strides = array<i32>} : memref<18x18x32xf32, #tpu.memory_space<vmem>>, vector<16x16x32xf32>,
    %c0_22 = arith.constant 0 : index
    %c0_23 = arith.constant 0 : index
    %c0_24 = arith.constant 0 : index
    %17 = vector.load %arg9[%c0_22, %c0_23, %c0_24] : memref<18x18x32xf32, #tpu.memory_space<vmem>>, vector<18x16x32xf32>
    %c0_25 = arith.constant 0 : index
    %c1_26 = arith.constant 1 : index
    %c0_27 = arith.constant 0 : index
    %18 = vector.load %arg9[%c0_25, %c1_26, %c0_27] : memref<18x18x32xf32, #tpu.memory_space<vmem>>, vector<18x16x32xf32>
    %c0_28 = arith.constant 0 : index
    %c2 = arith.constant 2 : index
    %c0_29 = arith.constant 0 : index
    %19 = vector.load %arg9[%c0_28, %c2, %c0_29] : memref<18x18x32xf32, #tpu.memory_space<vmem>>, vector<18x16x32xf32>
    %20 = tpu.concatenate %17, %18, %19 in 2 : vector<18x16x32xf32>, vector<18x16x32xf32>, vector<18x16x32xf32> -> vector<18x16x96xf32>
    %c0_30 = arith.constant 0 : index
    %c0_31 = arith.constant 0 : index
    %c0_32 = arith.constant 0 : index
    %21 = vector.load %arg10[%c0_30, %c0_31, %c0_32] : memref<18x16x96xf32, #tpu.memory_space<vmem>>, vector<18x16x96xf32>
    tpu.vector_store %arg10[%c0_30, %c0_31, %c0_32], %20 {strides = array<i32>} : memref<18x16x96xf32, #tpu.memory_space<vmem>>, vector<18x16x96xf32>,
    %c0_33 = arith.constant 0 : index
    %c0_34 = arith.constant 0 : index
    %c0_35 = arith.constant 0 : index
    %22 = vector.load %arg10[%c0_33, %c0_34, %c0_35] : memref<18x16x96xf32, #tpu.memory_space<vmem>>, vector<16x16x96xf32>
    %23 = vector.shape_cast %22 : vector<16x16x96xf32> to vector<256x96xf32>
    %c0_36 = arith.constant 0 : index
    %c0_37 = arith.constant 0 : index
    %c0_38 = arith.constant 0 : index
    %24 = vector.load %arg3[%c0_36, %c0_37, %c0_38] : memref<3x96x32xf32, #tpu.memory_space<vmem>>, vector<1x96x32xf32>
    %25 = vector.shape_cast %24 : vector<1x96x32xf32> to vector<96x32xf32>
    %cst_39 = arith.constant dense<0.000000e+00> : vector<256x32xf32>
    %26 = tpu.matmul %23, %25, %cst_39 {dimension_numbers = #tpu.dot_dimension_numbers<[1], [0], [0], [1], [0, 0, 1, 1], [], []>} : vector<256x96xf32>, vector<96x32xf32>, vector<256x32xf32> -> vector<256x32xf32>
    %c1_40 = arith.constant 1 : index
    %c0_41 = arith.constant 0 : index
    %c0_42 = arith.constant 0 : index
    %27 = vector.load %arg10[%c1_40, %c0_41, %c0_42] : memref<18x16x96xf32, #tpu.memory_space<vmem>>, vector<16x16x96xf32>
    %28 = vector.shape_cast %27 : vector<16x16x96xf32> to vector<256x96xf32>
    %c1_43 = arith.constant 1 : index
    %c0_44 = arith.constant 0 : index
    %c0_45 = arith.constant 0 : index
    %29 = vector.load %arg3[%c1_43, %c0_44, %c0_45] : memref<3x96x32xf32, #tpu.memory_space<vmem>>, vector<1x96x32xf32>
    %30 = vector.shape_cast %29 : vector<1x96x32xf32> to vector<96x32xf32>
    %cst_46 = arith.constant dense<0.000000e+00> : vector<256x32xf32>
    %31 = tpu.matmul %28, %30, %cst_46 {dimension_numbers = #tpu.dot_dimension_numbers<[1], [0], [0], [1], [0, 0, 1, 1], [], []>} : vector<256x96xf32>, vector<96x32xf32>, vector<256x32xf32> -> vector<256x32xf32>
    %32 = arith.addf %26, %31 : vector<256x32xf32>
    %c2_47 = arith.constant 2 : index
    %c0_48 = arith.constant 0 : index
    %c0_49 = arith.constant 0 : index
    %33 = vector.load %arg10[%c2_47, %c0_48, %c0_49] : memref<18x16x96xf32, #tpu.memory_space<vmem>>, vector<16x16x96xf32>
    %34 = vector.shape_cast %33 : vector<16x16x96xf32> to vector<256x96xf32>
    %c2_50 = arith.constant 2 : index
    %c0_51 = arith.constant 0 : index
    %c0_52 = arith.constant 0 : index
    %35 = vector.load %arg3[%c2_50, %c0_51, %c0_52] : memref<3x96x32xf32, #tpu.memory_space<vmem>>, vector<1x96x32xf32>
    %36 = vector.shape_cast %35 : vector<1x96x32xf32> to vector<96x32xf32>
    %cst_53 = arith.constant dense<0.000000e+00> : vector<256x32xf32>
    %37 = tpu.matmul %34, %36, %cst_53 {dimension_numbers = #tpu.dot_dimension_numbers<[1], [0], [0], [1], [0, 0, 1, 1], [], []>} : vector<256x96xf32>, vector<96x32xf32>, vector<256x32xf32> -> vector<256x32xf32>
    %38 = arith.addf %32, %37 : vector<256x32xf32>
    %c0_54 = arith.constant 0 : index
    %c0_55 = arith.constant 0 : index
    %39 = vector.load %arg6[%c0_54, %c0_55] : memref<1x32xf32, #tpu.memory_space<vmem>>, vector<1x32xf32>
    %40 = vector.broadcast %39 : vector<1x32xf32> to vector<256x32xf32>
    %41 = arith.addf %38, %40 : vector<256x32xf32>
    %cst_56 = arith.constant 0.000000e+00 : f32
    %42 = vector.broadcast %cst_56 : f32 to vector<256x32xf32>
    %43 = arith.maximumf %41, %42 : vector<256x32xf32>
    %c0_57 = arith.constant 0 : index
    %c0_58 = arith.constant 0 : index
    %44 = vector.load %arg4[%c0_57, %c0_58] : memref<32x128xf32, #tpu.memory_space<vmem>>, vector<32x128xf32>
    %cst_59 = arith.constant dense<0.000000e+00> : vector<256x128xf32>
    %45 = tpu.matmul %43, %44, %cst_59 {dimension_numbers = #tpu.dot_dimension_numbers<[1], [0], [0], [1], [0, 0, 1, 1], [], []>} : vector<256x32xf32>, vector<32x128xf32>, vector<256x128xf32> -> vector<256x128xf32>
    %c0_60 = arith.constant 0 : index
    %c0_61 = arith.constant 0 : index
    %46 = vector.load %arg7[%c0_60, %c0_61] : memref<1x128xf32, #tpu.memory_space<vmem>>, vector<1x128xf32>
    %47 = vector.broadcast %46 : vector<1x128xf32> to vector<256x128xf32>
    %48 = arith.addf %45, %47 : vector<256x128xf32>
    %49 = arith.addf %48, %1 : vector<256x128xf32>
    %cst_62 = arith.constant 0.000000e+00 : f32
    %50 = vector.broadcast %cst_62 : f32 to vector<256x128xf32>
    %51 = arith.maximumf %49, %50 : vector<256x128xf32>
    %c0_63 = arith.constant 0 : index
    %c0_64 = arith.constant 0 : index
    %c0_65 = arith.constant 0 : index
    %52 = vector.load %arg8[%c0_63, %c0_64, %c0_65] : memref<1x256x128xf32, #tpu.memory_space<vmem>>, vector<1x256x128xf32>
    %53 = vector.shape_cast %52 : vector<1x256x128xf32> to vector<256x128xf32>
    %54 = vector.shape_cast %51 : vector<256x128xf32> to vector<1x256x128xf32>
    tpu.vector_store %arg8[%c0_63, %c0_64, %c0_65], %54 {strides = array<i32>} : memref<1x256x128xf32, #tpu.memory_space<vmem>>, vector<1x256x128xf32>,
    return
  }
  func.func @transform_0(%arg0: i32) -> (i32, i32, i32) {
    %c0_i32 = arith.constant 0 : i32
    %c0_i32_0 = arith.constant 0 : i32
    %c0_i32_1 = arith.constant 0 : i32
    return %arg0, %c0_i32, %c0_i32_0 : i32, i32, i32
  }
  func.func @transform_1(%arg0: i32) -> (i32, i32) {
    %c0_i32 = arith.constant 0 : i32
    %c0_i32_0 = arith.constant 0 : i32
    %c0_i32_1 = arith.constant 0 : i32
    return %c0_i32, %c0_i32_0 : i32, i32
  }
  func.func @transform_2(%arg0: i32) -> (i32, i32, i32) {
    %c0_i32 = arith.constant 0 : i32
    %c0_i32_0 = arith.constant 0 : i32
    %c0_i32_1 = arith.constant 0 : i32
    %c0_i32_2 = arith.constant 0 : i32
    return %c0_i32, %c0_i32_0, %c0_i32_1 : i32, i32, i32
  }
  func.func @transform_3(%arg0: i32) -> (i32, i32) {
    %c0_i32 = arith.constant 0 : i32
    %c0_i32_0 = arith.constant 0 : i32
    %c0_i32_1 = arith.constant 0 : i32
    return %c0_i32, %c0_i32_0 : i32, i32
  }
  func.func @transform_4(%arg0: i32) -> (i32, i32) {
    %c0_i32 = arith.constant 0 : i32
    %c0_i32_0 = arith.constant 0 : i32
    %c0_i32_1 = arith.constant 0 : i32
    return %c0_i32, %c0_i32_0 : i32, i32
  }
  func.func @transform_5(%arg0: i32) -> (i32, i32) {
    %c0_i32 = arith.constant 0 : i32
    %c0_i32_0 = arith.constant 0 : i32
    %c0_i32_1 = arith.constant 0 : i32
    return %c0_i32, %c0_i32_0 : i32, i32
  }
  func.func @transform_6(%arg0: i32) -> (i32, i32) {
    %c0_i32 = arith.constant 0 : i32
    %c0_i32_0 = arith.constant 0 : i32
    %c0_i32_1 = arith.constant 0 : i32
    return %c0_i32, %c0_i32_0 : i32, i32
  }
  func.func @transform_7(%arg0: i32) -> (i32, i32, i32) {
    %c0_i32 = arith.constant 0 : i32
    %c0_i32_0 = arith.constant 0 : i32
    %c0_i32_1 = arith.constant 0 : i32
    return %arg0, %c0_i32, %c0_i32_0 : i32, i32, i32
  }
}

</mosaic_0001>

<llo_original>
// kernel: tpu_custom_call.1
$region0: #{tpu_custom_call.1}
  #allocation0 [shape = 'u32[]', space=smem, size = 0x4, offset = 0x4, fixed_abs, tag = 'smem constant byte address 0x4 - core index']
  #allocation1 [shape = 'u32[144,128]{1,0:T(1,128)}', space=vmem, size = 0x12000, scoped, tag = 'internal scratch']
  #allocation2 [shape = 'f32[18,18,32]{2,1,0:T(8,128)}', space=vmem, size = 0x36000, scoped, tag = 'scratch operand']
  #allocation3 [shape = 'f32[18,16,96]{2,1,0:T(8,128)}', space=vmem, size = 0x24000, scoped, tag = 'scratch operand']
  %s0 = inlined_call_operand.vmem [shape: f32[2,256,128], index: 0, kind: input, shape index: {}]
  %s1 = inlined_call_operand.vmem [shape: f32[128,32], index: 1, kind: input, shape index: {}]
  %s2 = inlined_call_operand.vmem [shape: f32[3,96,32], index: 2, kind: input, shape index: {}]
  %s3 = inlined_call_operand.vmem [shape: f32[32,128], index: 3, kind: input, shape index: {}]
  %s4 = inlined_call_operand.vmem [shape: f32[1,32], index: 4, kind: input, shape index: {}]
  %s5 = inlined_call_operand.vmem [shape: f32[1,32], index: 5, kind: input, shape index: {}]
  %s6 = inlined_call_operand.vmem [shape: f32[1,128], index: 6, kind: input, shape index: {}]
  %s7 = inlined_call_operand.hbm [shape: f32[2,256,128], index: 7, kind: output, shape index: {}]
  %s8 = sld [smem:[#allocation0]]
  $region61: #{tpu_custom_call.1} parent=0
    _
  %s10 = ssub.s32 1, %s8
  %s11 = scalar_select 0, %s10, %s8
  $region1: #{tpu_custom_call.1} parent=0
    #allocation4 [shape = 'u8[262144]{0}', space=vmem, size = 0x40000, scoped, tag = 'output window, operand 0']
    #allocation5 [shape = 's32[2]{0}', space=sflag, size = 0x8, scoped, tag = 'scoped memory for tpu_custom_call.1']
    %12 = vsyncpa [#allocation5], 0
    %s13 = scalar_lea.sflag [#allocation5], 1
    %14 = vsyncpa %s13, 0
    loop: start=0, step=1, limit=4
    $region2: #{tpu_custom_call.1} parent=1 // loop_pre_header
      _
    $region3: #{tpu_custom_call.1} parent=1 // loop_header
      %s16 = sphi 0, %s20
      %p17 = scmp.ge.s32.totalorder %s16, 4
      %s26 = sphi 0, %s28
      %s29 = sphi 0, %s26
      %s30 = sphi 0, %s29
      %s46 = sphi 0, %s30
      %s50 = sphi 0, %s50
      %s52 = sphi 0, %s50
      %s53 = sphi 0, %s52
      %s67 = sphi 0, %s53
      %s71 = sphi 0, %s71
      %s73 = sphi 0, %s71
      %s74 = sphi 0, %s73
      %s88 = sphi 0, %s74
      %s92 = sphi 0, %s92
      %s94 = sphi 0, %s92
      %s95 = sphi 0, %s94
      %s109 = sphi 0, %s95
      %s113 = sphi 0, %s113
      %s115 = sphi 0, %s113
      %s116 = sphi 0, %s115
      %s130 = sphi 0, %s116
      %s134 = sphi 0, %s134
      %s136 = sphi 0, %s134
      %s137 = sphi 0, %s136
      %s151 = sphi 0, %s137
      %s155 = sphi 0, %s155
      %s157 = sphi 0, %s155
      %s158 = sphi 0, %s157
      %s172 = sphi 0, %s158
      %s178 = sphi 0, %s180
      %s181 = sphi 0, %s178
      %s182 = sphi 0, %s181
      %s198 = sphi 0, %s182
    $region4: #{tpu_custom_call.1} parent=1 // loop_header_branch
      %19 = sbr.rel (%p17) target = $region8
    $region5: #{tpu_custom_call.1} parent=1 // loop_body
      %s21 = ssub.s32 %s16, 1
      %s22 = ssub.s32 %s16, 2
      %s23 = sadd.s32 %s16, 1
      %s24 = ssub.s32 %s16, %s23
      %p25 = scmp.eq.s32.totalorder %s24, 0
      %s27 = sadd.s32 %s26, 1
      %s28 = scalar_select %p25, %s26, %s27
      %p31 = pneg %p25
      %p32 = scmp.eq.s32.totalorder %s16, 1
      %p33 = por %p31, %p32
      %p34 = scmp.ne.s32.totalorder %s26, %s29
      %p35 = scmp.eq.s32.totalorder %s16, 0
      %p36 = por %p34, %p35
      %p37 = scmp.ne.s32.totalorder %s26, %s29
      %p38 = scmp.eq.s32.totalorder %s21, 1
      %p39 = por %p37, %p38
      %p40 = scmp.ne.s32.totalorder %s29, %s30
      %p41 = scmp.eq.s32.totalorder %s21, 0
      %p42 = por %p40, %p41
      %p43 = scmp.ne.s32.totalorder %s29, %s30
      %p44 = scmp.eq.s32.totalorder %s22, 1
      %p45 = por %p43, %p44
      %p47 = scmp.ne.s32.totalorder %s30, %s46
      %p48 = scmp.eq.s32.totalorder %s22, 0
      %p49 = por %p47, %p48
      %s51 = sadd.s32 %s50, 1
      %p54 = scmp.eq.s32.totalorder %s16, 1
      %p55 = scmp.ne.s32.totalorder %s50, %s52
      %p56 = scmp.eq.s32.totalorder %s16, 0
      %p57 = por %p55, %p56
      %p58 = scmp.ne.s32.totalorder %s50, %s52
      %p59 = scmp.eq.s32.totalorder %s21, 1
      %p60 = por %p58, %p59
      %p61 = scmp.ne.s32.totalorder %s52, %s53
      %p62 = scmp.eq.s32.totalorder %s21, 0
      %p63 = por %p61, %p62
      %p64 = scmp.ne.s32.totalorder %s52, %s53
      %p65 = scmp.eq.s32.totalorder %s22, 1
      %p66 = por %p64, %p65
      %p68 = scmp.ne.s32.totalorder %s53, %s67
      %p69 = scmp.eq.s32.totalorder %s22, 0
      %p70 = por %p68, %p69
      %s72 = sadd.s32 %s71, 1
      %p75 = scmp.eq.s32.totalorder %s16, 1
      %p76 = scmp.ne.s32.totalorder %s71, %s73
      %p77 = scmp.eq.s32.totalorder %s16, 0
      %p78 = por %p76, %p77
      %p79 = scmp.ne.s32.totalorder %s71, %s73
      %p80 = scmp.eq.s32.totalorder %s21, 1
      %p81 = por %p79, %p80
      %p82 = scmp.ne.s32.totalorder %s73, %s74
      %p83 = scmp.eq.s32.totalorder %s21, 0
      %p84 = por %p82, %p83
      %p85 = scmp.ne.s32.totalorder %s73, %s74
      %p86 = scmp.eq.s32.totalorder %s22, 1
      %p87 = por %p85, %p86
      %p89 = scmp.ne.s32.totalorder %s74, %s88
      %p90 = scmp.eq.s32.totalorder %s22, 0
      %p91 = por %p89, %p90
      %s93 = sadd.s32 %s92, 1
      %p96 = scmp.eq.s32.totalorder %s16, 1
      %p97 = scmp.ne.s32.totalorder %s92, %s94
      %p98 = scmp.eq.s32.totalorder %s16, 0
      %p99 = por %p97, %p98
      %p100 = scmp.ne.s32.totalorder %s92, %s94
      %p101 = scmp.eq.s32.totalorder %s21, 1
      %p102 = por %p100, %p101
      %p103 = scmp.ne.s32.totalorder %s94, %s95
      %p104 = scmp.eq.s32.totalorder %s21, 0
      %p105 = por %p103, %p104
      %p106 = scmp.ne.s32.totalorder %s94, %s95
      %p107 = scmp.eq.s32.totalorder %s22, 1
      %p108 = por %p106, %p107
      %p110 = scmp.ne.s32.totalorder %s95, %s109
      %p111 = scmp.eq.s32.totalorder %s22, 0
      %p112 = por %p110, %p111
      %s114 = sadd.s32 %s113, 1
      %p117 = scmp.eq.s32.totalorder %s16, 1
      %p118 = scmp.ne.s32.totalorder %s113, %s115
      %p119 = scmp.eq.s32.totalorder %s16, 0
      %p120 = por %p118, %p119
      %p121 = scmp.ne.s32.totalorder %s113, %s115
      %p122 = scmp.eq.s32.totalorder %s21, 1
      %p123 = por %p121, %p122
      %p124 = scmp.ne.s32.totalorder %s115, %s116
      %p125 = scmp.eq.s32.totalorder %s21, 0
      %p126 = por %p124, %p125
      %p127 = scmp.ne.s32.totalorder %s115, %s116
      %p128 = scmp.eq.s32.totalorder %s22, 1
      %p129 = por %p127, %p128
      %p131 = scmp.ne.s32.totalorder %s116, %s130
      %p132 = scmp.eq.s32.totalorder %s22, 0
      %p133 = por %p131, %p132
      %s135 = sadd.s32 %s134, 1
      %p138 = scmp.eq.s32.totalorder %s16, 1
      %p139 = scmp.ne.s32.totalorder %s134, %s136
      %p140 = scmp.eq.s32.totalorder %s16, 0
      %p141 = por %p139, %p140
      %p142 = scmp.ne.s32.totalorder %s134, %s136
      %p143 = scmp.eq.s32.totalorder %s21, 1
      %p144 = por %p142, %p143
      %p145 = scmp.ne.s32.totalorder %s136, %s137
      %p146 = scmp.eq.s32.totalorder %s21, 0
      %p147 = por %p145, %p146
      %p148 = scmp.ne.s32.totalorder %s136, %s137
      %p149 = scmp.eq.s32.totalorder %s22, 1
      %p150 = por %p148, %p149
      %p152 = scmp.ne.s32.totalorder %s137, %s151
      %p153 = scmp.eq.s32.totalorder %s22, 0
      %p154 = por %p152, %p153
      %s156 = sadd.s32 %s155, 1
      %p159 = scmp.eq.s32.totalorder %s16, 1
      %p160 = scmp.ne.s32.totalorder %s155, %s157
      %p161 = scmp.eq.s32.totalorder %s16, 0
      %p162 = por %p160, %p161
      %p163 = scmp.ne.s32.totalorder %s155, %s157
      %p164 = scmp.eq.s32.totalorder %s21, 1
      %p165 = por %p163, %p164
      %p166 = scmp.ne.s32.totalorder %s157, %s158
      %p167 = scmp.eq.s32.totalorder %s21, 0
      %p168 = por %p166, %p167
      %p169 = scmp.ne.s32.totalorder %s157, %s158
      %p170 = scmp.eq.s32.totalorder %s22, 1
      %p171 = por %p169, %p170
      %p173 = scmp.ne.s32.totalorder %s158, %s172
      %p174 = scmp.eq.s32.totalorder %s22, 0
      %p175 = por %p173, %p174
      %s176 = ssub.s32 %s16, %s23
      %p177 = scmp.eq.s32.totalorder %s176, 0
      %s179 = sadd.s32 %s178, 1
      %s180 = scalar_select %p177, %s178, %s179
      %p183 = pneg %p177
      %p184 = scmp.eq.s32.totalorder %s16, 1
      %p185 = por %p183, %p184
      %p186 = scmp.ne.s32.totalorder %s178, %s181
      %p187 = scmp.eq.s32.totalorder %s16, 0
      %p188 = por %p186, %p187
      %p189 = scmp.ne.s32.totalorder %s178, %s181
      %p190 = scmp.eq.s32.totalorder %s21, 1
      %p191 = por %p189, %p190
      %p192 = scmp.ne.s32.totalorder %s181, %s182
      %p193 = scmp.eq.s32.totalorder %s21, 0
      %p194 = por %p192, %p193
      %p195 = scmp.ne.s32.totalorder %s181, %s182
      %p196 = scmp.eq.s32.totalorder %s22, 1
      %p197 = por %p195, %p196
      %p199 = scmp.ne.s32.totalorder %s182, %s198
      %p200 = scmp.eq.s32.totalorder %s22, 0
      %p201 = por %p199, %p200
      %p202 = scmp.le.s32.totalorder 1, %s16
      %p203 = scmp.lt.s32.totalorder %s16, 3
      %p204 = pnand %p202, %p203
      %p205 = pneg %p204
      // Predicated region
      $region9: #{tpu_custom_call.1} parent=5 // pred_check
        _
      $region10: #{tpu_custom_call.1} parent=5 // pred_check_branch
        %207 = sbr.rel (%p204) target = $region12
      $region11: #{tpu_custom_call.1} parent=5 // pred_region
        %s208 = ssub.s32 %s16, 1
        // Predicated region
        $region13: #{tpu_custom_call.1} parent=11 // pred_check
          %p209 = pneg %p63
        $region14: #{tpu_custom_call.1} parent=11 // pred_check_branch
          %211 = sbr.rel (%p209) target = $region16
        $region15: #{tpu_custom_call.1} parent=11 // pred_region
          _
        $region16: #{tpu_custom_call.1} parent=11 // pred_fallthru
          _
        // Predicated region
        $region17: #{tpu_custom_call.1} parent=11 // pred_check
          %p212 = pneg %p84
        $region18: #{tpu_custom_call.1} parent=11 // pred_check_branch
          %214 = sbr.rel (%p212) target = $region20
        $region19: #{tpu_custom_call.1} parent=11 // pred_region
          _
        $region20: #{tpu_custom_call.1} parent=11 // pred_fallthru
          _
        // Predicated region
        $region21: #{tpu_custom_call.1} parent=11 // pred_check
          %p215 = pneg %p105
        $region22: #{tpu_custom_call.1} parent=11 // pred_check_branch
          %217 = sbr.rel (%p215) target = $region24
        $region23: #{tpu_custom_call.1} parent=11 // pred_region
          _
        $region24: #{tpu_custom_call.1} parent=11 // pred_fallthru
          _
        // Predicated region
        $region25: #{tpu_custom_call.1} parent=11 // pred_check
          %p218 = pneg %p126
        $region26: #{tpu_custom_call.1} parent=11 // pred_check_branch
          %220 = sbr.rel (%p218) target = $region28
        $region27: #{tpu_custom_call.1} parent=11 // pred_region
          _
        $region28: #{tpu_custom_call.1} parent=11 // pred_fallthru
          _
        // Predicated region
        $region29: #{tpu_custom_call.1} parent=11 // pred_check
          %p221 = pneg %p147
        $region30: #{tpu_custom_call.1} parent=11 // pred_check_branch
          %223 = sbr.rel (%p221) target = $region32
        $region31: #{tpu_custom_call.1} parent=11 // pred_region
          _
        $region32: #{tpu_custom_call.1} parent=11 // pred_fallthru
          _
        // Predicated region
        $region33: #{tpu_custom_call.1} parent=11 // pred_check
          %p224 = pneg %p168
        $region34: #{tpu_custom_call.1} parent=11 // pred_check_branch
          %226 = sbr.rel (%p224) target = $region36
        $region35: #{tpu_custom_call.1} parent=11 // pred_region
          _
        $region36: #{tpu_custom_call.1} parent=11 // pred_fallthru
          _
      $region12: #{tpu_custom_call.1} parent=5 // pred_fallthru
        _
      %p227 = scmp.lt.s32.totalorder %s16, 2
      // Predicated region
      $region37: #{tpu_custom_call.1} parent=5 // pred_check
        %p228 = pneg %p227
      $region38: #{tpu_custom_call.1} parent=5 // pred_check_branch
        %230 = sbr.rel (%p228) target = $region40
      $region39: #{tpu_custom_call.1} parent=5 // pred_region
        // Predicated region
        $region41: #{tpu_custom_call.1} parent=39 // pred_check
          %p231 = pneg %p36
        $region42: #{tpu_custom_call.1} parent=39 // pred_check_branch
          %233 = sbr.rel (%p231) target = $region44
        $region43: #{tpu_custom_call.1} parent=39 // pred_region
          %p234 = scmp.lt.s32.totalorder %s16, 1
          %s235 = scalar_select %p234, %s16, 1
          %s236 = smul.addr %s235, 32
          %s237 = smul.addr %s236, 8
          %s238 = scalar_lea.vmem %s0, %s237
        $region44: #{tpu_custom_call.1} parent=39 // pred_fallthru
          _
      $region40: #{tpu_custom_call.1} parent=5 // pred_fallthru
        _
      %p239 = scmp.le.s32.totalorder 1, %s16
      %p240 = scmp.lt.s32.totalorder %s16, 3
      %p241 = pnand %p239, %p240
      %p242 = pneg %p241
      // Predicated region
      $region45: #{tpu_custom_call.1} parent=5 // pred_check
        _
      $region46: #{tpu_custom_call.1} parent=5 // pred_check_branch
        %244 = sbr.rel (%p241) target = $region48
      $region47: #{tpu_custom_call.1} parent=5 // pred_region
        %s245 = ssub.s32 %s16, 1
        %p246 = scmp.lt.s32.totalorder %s21, 1
        %s247 = scalar_select %p246, %s21, 1
        %s248 = smul.addr %s247, 32
        %s249 = smul.addr %s248, 8
        %s250 = scalar_lea.vmem %s0, %s249
        %p251 = pneg %p42
        %p252 = pneg %p39
        %p253 = pneg %p63
        %p254 = pneg %p60
        %p255 = pneg %p84
        %p256 = pneg %p81
        %p257 = pneg %p105
        %p258 = pneg %p102
        %p259 = pneg %p126
        %p260 = pneg %p123
        %p261 = pneg %p147
        %p262 = pneg %p144
        %p263 = pneg %p168
        %p264 = pneg %p165
        %p265 = pneg %p194
        %p266 = pneg %p191
        %s267 = sand.u32 %s181, 1
        %s268 = scalar_lea.sflag [#allocation5], %s267
        %s269 = sand.u32 %s181, 1
        %s270 = smul.addr %s269, 256
        %s271 = scalar_lea.vmem [#allocation4], %s270
        %p272 = scmp.lt.s32.totalorder %s21, 1
        %s273 = scalar_select %p272, %s21, 1
        %s274 = smul.addr %s273, 32
        %s275 = smul.addr %s274, 8
        %s276 = scalar_lea.vmem %s0, %s275
        %v277 = vld [vmem:[%s276] sm:$0xff]
        %v278 = vld [vmem:[%s276 + $0x8] sm:$0xff]
        %v279 = vld [vmem:[%s276 + $0x10] sm:$0xff]
        %v280 = vld [vmem:[%s276 + $0x18] sm:$0xff]
        %v281 = vld [vmem:[%s276 + $0x20] sm:$0xff]
        %v282 = vld [vmem:[%s276 + $0x28] sm:$0xff]
        %v283 = vld [vmem:[%s276 + $0x30] sm:$0xff]
        %v284 = vld [vmem:[%s276 + $0x38] sm:$0xff]
        %v285 = vld [vmem:[%s276 + $0x40] sm:$0xff]
        %v286 = vld [vmem:[%s276 + $0x48] sm:$0xff]
        %v287 = vld [vmem:[%s276 + $0x50] sm:$0xff]
        %v288 = vld [vmem:[%s276 + $0x58] sm:$0xff]
        %v289 = vld [vmem:[%s276 + $0x60] sm:$0xff]
        %v290 = vld [vmem:[%s276 + $0x68] sm:$0xff]
        %v291 = vld [vmem:[%s276 + $0x70] sm:$0xff]
        %v292 = vld [vmem:[%s276 + $0x78] sm:$0xff]
        %v293 = vld [vmem:[%s276 + $0x80] sm:$0xff]
        %v294 = vld [vmem:[%s276 + $0x88] sm:$0xff]
        %v295 = vld [vmem:[%s276 + $0x90] sm:$0xff]
        %v296 = vld [vmem:[%s276 + $0x98] sm:$0xff]
        %v297 = vld [vmem:[%s276 + $0xa0] sm:$0xff]
        %v298 = vld [vmem:[%s276 + $0xa8] sm:$0xff]
        %v299 = vld [vmem:[%s276 + $0xb0] sm:$0xff]
        %v300 = vld [vmem:[%s276 + $0xb8] sm:$0xff]
        %v301 = vld [vmem:[%s276 + $0xc0] sm:$0xff]
        %v302 = vld [vmem:[%s276 + $0xc8] sm:$0xff]
        %v303 = vld [vmem:[%s276 + $0xd0] sm:$0xff]
        %v304 = vld [vmem:[%s276 + $0xd8] sm:$0xff]
        %v305 = vld [vmem:[%s276 + $0xe0] sm:$0xff]
        %v306 = vld [vmem:[%s276 + $0xe8] sm:$0xff]
        %v307 = vld [vmem:[%s276 + $0xf0] sm:$0xff]
        %v308 = vld [vmem:[%s276 + $0xf8] sm:$0xff]
        %v309 = vld [vmem:[%s1] sm:$0xff]
        %v310 = vld [vmem:[%s1 + $0x8] sm:$0xff]
        %v311 = vld [vmem:[%s1 + $0x10] sm:$0xff]
        %v312 = vld [vmem:[%s1 + $0x18] sm:$0xff]
        %v313 = vld [vmem:[%s1 + $0x20] sm:$0xff]
        %v314 = vld [vmem:[%s1 + $0x28] sm:$0xff]
        %v315 = vld [vmem:[%s1 + $0x30] sm:$0xff]
        %v316 = vld [vmem:[%s1 + $0x38] sm:$0xff]
        %v317 = vld [vmem:[%s1 + $0x40] sm:$0xff]
        %v318 = vld [vmem:[%s1 + $0x48] sm:$0xff]
        %v319 = vld [vmem:[%s1 + $0x50] sm:$0xff]
        %v320 = vld [vmem:[%s1 + $0x58] sm:$0xff]
        %v321 = vld [vmem:[%s1 + $0x60] sm:$0xff]
        %v322 = vld [vmem:[%s1 + $0x68] sm:$0xff]
        %v323 = vld [vmem:[%s1 + $0x70] sm:$0xff]
        %v324 = vld [vmem:[%s1 + $0x78] sm:$0xff]
        %v325 = vld [vmem:[%s4] sm:$0x1]
        %v327 = vlaneseq
        %v328 = vshrl.u32 %v327, 7
        %v329 = vsub.s32 0, %v328
        %v330 = vrot.slane %v325, %v329
        %332 = vmatprep.subr.mxu0 0.0
        %333 = vmatpush1.msra.mxu0 %v309
        %334 = vmatprep.subr.mxu0 0.0
        %335 = vmatpush1.msra.mxu0 %v310
        %336 = vmatprep.subr.mxu0 0.0
        %337 = vmatpush1.msra.mxu0 %v311
        %338 = vmatprep.subr.mxu0 0.0
        %339 = vmatpush1.msra.mxu0 %v312
        %340 = vmatprep.subr.mxu0 0.0
        %341 = vmatpush1.msra.mxu0 %v313
        %342 = vmatprep.subr.mxu0 0.0
        %343 = vmatpush1.msra.mxu0 %v314
        %344 = vmatprep.subr.mxu0 0.0
        %345 = vmatpush1.msra.mxu0 %v315
        %346 = vmatprep.subr.mxu0 0.0
        %347 = vmatpush1.msra.mxu0 %v316
        %348 = vmatprep.subr.mxu0 0.0
        %349 = vmatpush1.msra.mxu0 %v317
        %350 = vmatprep.subr.mxu0 0.0
        %351 = vmatpush1.msra.mxu0 %v318
        %352 = vmatprep.subr.mxu0 0.0
        %353 = vmatpush1.msra.mxu0 %v319
        %354 = vmatprep.subr.mxu0 0.0
        %355 = vmatpush1.msra.mxu0 %v320
        %356 = vmatprep.subr.mxu0 0.0
        %357 = vmatpush1.msra.mxu0 %v321
        %358 = vmatprep.subr.mxu0 0.0
        %359 = vmatpush1.msra.mxu0 %v322
        %360 = vmatprep.subr.mxu0 0.0
        %361 = vmatpush1.msra.mxu0 %v323
        %362 = vmatprep.subr.mxu0 0.0
        %363 = vmatpush1.msra.mxu0 %v324
        %364 = vmatprep.subr.mxu0 0.0
        %365 = vmatpush1.msra.mxu0 0.0
        %366 = vmatprep.subr.mxu0 0.0
        %367 = vmatpush1.msra.mxu0 0.0
        %368 = vmatprep.subr.mxu0 0.0
        %369 = vmatpush1.msra.mxu0 0.0
        %370 = vmatprep.subr.mxu0 0.0
        %371 = vmatpush1.msra.mxu0 0.0
        %372 = vmatprep.subr.mxu0 0.0
        %373 = vmatpush1.msra.mxu0 0.0
        %374 = vmatprep.subr.mxu0 0.0
        %375 = vmatpush1.msra.mxu0 0.0
        %376 = vmatprep.subr.mxu0 0.0
        %377 = vmatpush1.msra.mxu0 0.0
        %378 = vmatprep.subr.mxu0 0.0
        %379 = vmatpush1.msra.mxu0 0.0
        %380 = vmatprep.subr.mxu0 0.0
        %381 = vmatpush1.msra.mxu0 0.0
        %382 = vmatprep.subr.mxu0 0.0
        %383 = vmatpush1.msra.mxu0 0.0
        %384 = vmatprep.subr.mxu0 0.0
        %385 = vmatpush1.msra.mxu0 0.0
        %386 = vmatprep.subr.mxu0 0.0
        %387 = vmatpush1.msra.mxu0 0.0
        %388 = vmatprep.subr.mxu0 0.0
        %389 = vmatpush1.msra.mxu0 0.0
        %390 = vmatprep.subr.mxu0 0.0
        %391 = vmatpush1.msra.mxu0 0.0
        %392 = vmatprep.subr.mxu0 0.0
        %393 = vmatpush1.msra.mxu0 0.0
        %394 = vmatprep.subr.mxu0 0.0
        %395 = vmatpush1.msra.mxu0 0.0
        %396 = vmatprep.mubr.f32.mxu0 0.0
        %397 = vmatmul.mubr.f32.gmra.mrb[0].mxu0 %v277
        %v398 = vpop.f32.mrb[0].mxu0
        %v399 = vadd.f32 %v330, %v398
        %v400 = vpop.f32.mrb[0].mxu0
        %401 = vmatprep.mubr.f32.mxu0 0.0
        %402 = vmatmul.mubr.f32.gmra.mrb[0].mxu0 %v278
        %v403 = vpop.f32.mrb[0].mxu0
        %v404 = vadd.f32 %v330, %v403
        %v405 = vpop.f32.mrb[0].mxu0
        %406 = vmatprep.mubr.f32.mxu0 0.0
        %407 = vmatmul.mubr.f32.gmra.mrb[0].mxu0 %v279
        %v408 = vpop.f32.mrb[0].mxu0
        %v409 = vadd.f32 %v330, %v408
        %v410 = vpop.f32.mrb[0].mxu0
        %411 = vmatprep.mubr.f32.mxu0 0.0
        %412 = vmatmul.mubr.f32.gmra.mrb[0].mxu0 %v280
        %v413 = vpop.f32.mrb[0].mxu0
        %v414 = vadd.f32 %v330, %v413
        %v415 = vpop.f32.mrb[0].mxu0
        %416 = vmatprep.mubr.f32.mxu0 0.0
        %417 = vmatmul.mubr.f32.gmra.mrb[0].mxu0 %v281
        %v418 = vpop.f32.mrb[0].mxu0
        %v419 = vadd.f32 %v330, %v418
        %v420 = vpop.f32.mrb[0].mxu0
        %421 = vmatprep.mubr.f32.mxu0 0.0
        %422 = vmatmul.mubr.f32.gmra.mrb[0].mxu0 %v282
        %v423 = vpop.f32.mrb[0].mxu0
        %v424 = vadd.f32 %v330, %v423
        %v425 = vpop.f32.mrb[0].mxu0
        %426 = vmatprep.mubr.f32.mxu0 0.0
        %427 = vmatmul.mubr.f32.gmra.mrb[0].mxu0 %v283
        %v428 = vpop.f32.mrb[0].mxu0
        %v429 = vadd.f32 %v330, %v428
        %v430 = vpop.f32.mrb[0].mxu0
        %431 = vmatprep.mubr.f32.mxu0 0.0
        %432 = vmatmul.mubr.f32.gmra.mrb[0].mxu0 %v284
        %v433 = vpop.f32.mrb[0].mxu0
        %v434 = vadd.f32 %v330, %v433
        %v435 = vpop.f32.mrb[0].mxu0
        %436 = vmatprep.mubr.f32.mxu0 0.0
        %437 = vmatmul.mubr.f32.gmra.mrb[0].mxu0 %v285
        %v438 = vpop.f32.mrb[0].mxu0
        %v439 = vadd.f32 %v330, %v438
        %v440 = vpop.f32.mrb[0].mxu0
        %441 = vmatprep.mubr.f32.mxu0 0.0
        %442 = vmatmul.mubr.f32.gmra.mrb[0].mxu0 %v286
        %v443 = vpop.f32.mrb[0].mxu0
        %v444 = vadd.f32 %v330, %v443
        %v445 = vpop.f32.mrb[0].mxu0
        %446 = vmatprep.mubr.f32.mxu0 0.0
        %447 = vmatmul.mubr.f32.gmra.mrb[0].mxu0 %v287
        %v448 = vpop.f32.mrb[0].mxu0
        %v449 = vadd.f32 %v330, %v448
        %v450 = vpop.f32.mrb[0].mxu0
        %451 = vmatprep.mubr.f32.mxu0 0.0
        %452 = vmatmul.mubr.f32.gmra.mrb[0].mxu0 %v288
        %v453 = vpop.f32.mrb[0].mxu0
        %v454 = vadd.f32 %v330, %v453
        %v455 = vpop.f32.mrb[0].mxu0
        %456 = vmatprep.mubr.f32.mxu0 0.0
        %457 = vmatmul.mubr.f32.gmra.mrb[0].mxu0 %v289
        %v458 = vpop.f32.mrb[0].mxu0
        %v459 = vadd.f32 %v330, %v458
        %v460 = vpop.f32.mrb[0].mxu0
        %461 = vmatprep.mubr.f32.mxu0 0.0
        %462 = vmatmul.mubr.f32.gmra.mrb[0].mxu0 %v290
        %v463 = vpop.f32.mrb[0].mxu0
        %v464 = vadd.f32 %v330, %v463
        %v465 = vpop.f32.mrb[0].mxu0
        %466 = vmatprep.mubr.f32.mxu0 0.0
        %467 = vmatmul.mubr.f32.gmra.mrb[0].mxu0 %v291
        %v468 = vpop.f32.mrb[0].mxu0
        %v469 = vadd.f32 %v330, %v468
        %v470 = vpop.f32.mrb[0].mxu0
        %471 = vmatprep.mubr.f32.mxu0 0.0
        %472 = vmatmul.mubr.f32.gmra.mrb[0].mxu0 %v292
        %v473 = vpop.f32.mrb[0].mxu0
        %v474 = vadd.f32 %v330, %v473
        %v475 = vpop.f32.mrb[0].mxu0
        %476 = vmatprep.mubr.f32.mxu0 0.0
        %477 = vmatmul.mubr.f32.gmra.mrb[0].mxu0 %v293
        %v478 = vpop.f32.mrb[0].mxu0
        %v479 = vadd.f32 %v330, %v478
        %v480 = vpop.f32.mrb[0].mxu0
        %481 = vmatprep.mubr.f32.mxu0 0.0
        %482 = vmatmul.mubr.f32.gmra.mrb[0].mxu0 %v294
        %v483 = vpop.f32.mrb[0].mxu0
        %v484 = vadd.f32 %v330, %v483
        %v485 = vpop.f32.mrb[0].mxu0
        %486 = vmatprep.mubr.f32.mxu0 0.0
        %487 = vmatmul.mubr.f32.gmra.mrb[0].mxu0 %v295
        %v488 = vpop.f32.mrb[0].mxu0
        %v489 = vadd.f32 %v330, %v488
        %v490 = vpop.f32.mrb[0].mxu0
        %491 = vmatprep.mubr.f32.mxu0 0.0
        %492 = vmatmul.mubr.f32.gmra.mrb[0].mxu0 %v296
        %v493 = vpop.f32.mrb[0].mxu0
        %v494 = vadd.f32 %v330, %v493
        %v495 = vpop.f32.mrb[0].mxu0
        %496 = vmatprep.mubr.f32.mxu0 0.0
        %497 = vmatmul.mubr.f32.gmra.mrb[0].mxu0 %v297
        %v498 = vpop.f32.mrb[0].mxu0
        %v499 = vadd.f32 %v330, %v498
        %v500 = vpop.f32.mrb[0].mxu0
        %501 = vmatprep.mubr.f32.mxu0 0.0
        %502 = vmatmul.mubr.f32.gmra.mrb[0].mxu0 %v298
        %v503 = vpop.f32.mrb[0].mxu0
        %v504 = vadd.f32 %v330, %v503
        %v505 = vpop.f32.mrb[0].mxu0
        %506 = vmatprep.mubr.f32.mxu0 0.0
        %507 = vmatmul.mubr.f32.gmra.mrb[0].mxu0 %v299
        %v508 = vpop.f32.mrb[0].mxu0
        %v509 = vadd.f32 %v330, %v508
        %v510 = vpop.f32.mrb[0].mxu0
        %511 = vmatprep.mubr.f32.mxu0 0.0
        %512 = vmatmul.mubr.f32.gmra.mrb[0].mxu0 %v300
        %v513 = vpop.f32.mrb[0].mxu0
        %v514 = vadd.f32 %v330, %v513
        %v515 = vpop.f32.mrb[0].mxu0
        %516 = vmatprep.mubr.f32.mxu0 0.0
        %517 = vmatmul.mubr.f32.gmra.mrb[0].mxu0 %v301
        %v518 = vpop.f32.mrb[0].mxu0
        %v519 = vadd.f32 %v330, %v518
        %v520 = vpop.f32.mrb[0].mxu0
        %521 = vmatprep.mubr.f32.mxu0 0.0
        %522 = vmatmul.mubr.f32.gmra.mrb[0].mxu0 %v302
        %v523 = vpop.f32.mrb[0].mxu0
        %v524 = vadd.f32 %v330, %v523
        %v525 = vpop.f32.mrb[0].mxu0
        %526 = vmatprep.mubr.f32.mxu0 0.0
        %527 = vmatmul.mubr.f32.gmra.mrb[0].mxu0 %v303
        %v528 = vpop.f32.mrb[0].mxu0
        %v529 = vadd.f32 %v330, %v528
        %v530 = vpop.f32.mrb[0].mxu0
        %531 = vmatprep.mubr.f32.mxu0 0.0
        %532 = vmatmul.mubr.f32.gmra.mrb[0].mxu0 %v304
        %v533 = vpop.f32.mrb[0].mxu0
        %v534 = vadd.f32 %v330, %v533
        %v535 = vpop.f32.mrb[0].mxu0
        %536 = vmatprep.mubr.f32.mxu0 0.0
        %537 = vmatmul.mubr.f32.gmra.mrb[0].mxu0 %v305
        %v538 = vpop.f32.mrb[0].mxu0
        %v539 = vadd.f32 %v330, %v538
        %v540 = vpop.f32.mrb[0].mxu0
        %541 = vmatprep.mubr.f32.mxu0 0.0
        %542 = vmatmul.mubr.f32.gmra.mrb[0].mxu0 %v306
        %v543 = vpop.f32.mrb[0].mxu0
        %v544 = vadd.f32 %v330, %v543
        %v545 = vpop.f32.mrb[0].mxu0
        %546 = vmatprep.mubr.f32.mxu0 0.0
        %547 = vmatmul.mubr.f32.gmra.mrb[0].mxu0 %v307
        %v548 = vpop.f32.mrb[0].mxu0
        %v549 = vadd.f32 %v330, %v548
        %v550 = vpop.f32.mrb[0].mxu0
        %551 = vmatprep.mubr.f32.mxu0 0.0
        %552 = vmatmul.mubr.f32.gmra.mrb[0].mxu0 %v308
        %v553 = vpop.f32.mrb[0].mxu0
        %v554 = vadd.f32 %v330, %v553
        %v555 = vpop.f32.mrb[0].mxu0
        %556 = vdwg.mxu0
        %v557 = vmax.f32 %v399, 0.0
        %v558 = vmax.f32 %v404, 0.0
        %v559 = vmax.f32 %v409, 0.0
        %v560 = vmax.f32 %v414, 0.0
        %v561 = vmax.f32 %v419, 0.0
        %v562 = vmax.f32 %v424, 0.0
        %v563 = vmax.f32 %v429, 0.0
        %v564 = vmax.f32 %v434, 0.0
        %v565 = vmax.f32 %v439, 0.0
        %v566 = vmax.f32 %v444, 0.0
        %v567 = vmax.f32 %v449, 0.0
        %v568 = vmax.f32 %v454, 0.0
        %v569 = vmax.f32 %v459, 0.0
        %v570 = vmax.f32 %v464, 0.0
        %v571 = vmax.f32 %v469, 0.0
        %v572 = vmax.f32 %v474, 0.0
        %v573 = vmax.f32 %v479, 0.0
        %v574 = vmax.f32 %v484, 0.0
        %v575 = vmax.f32 %v489, 0.0
        %v576 = vmax.f32 %v494, 0.0
        %v577 = vmax.f32 %v499, 0.0
        %v578 = vmax.f32 %v504, 0.0
        %v579 = vmax.f32 %v509, 0.0
        %v580 = vmax.f32 %v514, 0.0
        %v581 = vmax.f32 %v519, 0.0
        %v582 = vmax.f32 %v524, 0.0
        %v583 = vmax.f32 %v529, 0.0
        %v584 = vmax.f32 %v534, 0.0
        %v585 = vmax.f32 %v539, 0.0
        %v586 = vmax.f32 %v544, 0.0
        %v587 = vmax.f32 %v549, 0.0
        %v588 = vmax.f32 %v554, 0.0
        %vm589 = vcmask 261120
        %590 = vst.msk [vmem:[#allocation2] sm:$0xff] %vm589, 0.0
        %591 = vst.msk [vmem:[#allocation2 + $0x8] sm:$0xff] %vm589, 0.0
        %vm592 = vcmask 254976
        %593 = vst.msk [vmem:[#allocation2 + $0x10] sm:$0x3] %vm592, 0.0
        %s594 = scalar_lea.vmem [#allocation2], 408
        %595 = vst.msk [vmem:[%s594] sm:$0xff] %vm589, 0.0
        %596 = vst.msk [vmem:[%s594 + $0x8] sm:$0xff] %vm589, 0.0
        %597 = vst.msk [vmem:[%s594 + $0x10] sm:$0x3] %vm592, 0.0
        %vm598 = vcmask 253952
        %599 = vst.msk [vmem:[#allocation2] sm:$0x1] %vm598, 0.0
        %600 = vst.msk [vmem:[#allocation2 + $0x18] sm:$0x1] %vm598, 0.0
        %601 = vst.msk [vmem:[#allocation2 + $0x30] sm:$0x1] %vm598, 0.0
        %602 = vst.msk [vmem:[#allocation2 + $0x48] sm:$0x1] %vm598, 0.0
        %603 = vst.msk [vmem:[#allocation2 + $0x60] sm:$0x1] %vm598, 0.0
        %604 = vst.msk [vmem:[#allocation2 + $0x78] sm:$0x1] %vm598, 0.0
        %605 = vst.msk [vmem:[#allocation2 + $0x90] sm:$0x1] %vm598, 0.0
        %606 = vst.msk [vmem:[#allocation2 + $0xa8] sm:$0x1] %vm598, 0.0
        %607 = vst.msk [vmem:[#allocation2 + $0xc0] sm:$0x1] %vm598, 0.0
        %608 = vst.msk [vmem:[#allocation2 + $0xd8] sm:$0x1] %vm598, 0.0
        %609 = vst.msk [vmem:[#allocation2 + $0xf0] sm:$0x1] %vm598, 0.0
        %610 = vst.msk [vmem:[#allocation2 + $0x108] sm:$0x1] %vm598, 0.0
        %611 = vst.msk [vmem:[#allocation2 + $0x120] sm:$0x1] %vm598, 0.0
        %612 = vst.msk [vmem:[#allocation2 + $0x138] sm:$0x1] %vm598, 0.0
        %613 = vst.msk [vmem:[#allocation2 + $0x150] sm:$0x1] %vm598, 0.0
        %614 = vst.msk [vmem:[#allocation2 + $0x168] sm:$0x1] %vm598, 0.0
        %615 = vst.msk [vmem:[#allocation2 + $0x180] sm:$0x1] %vm598, 0.0
        %616 = vst.msk [vmem:[#allocation2 + $0x198] sm:$0x1] %vm598, 0.0
        %617 = vst.msk [vmem:[#allocation2 + $0x11] sm:$0x1] %vm598, 0.0
        %618 = vst.msk [vmem:[#allocation2 + $0x29] sm:$0x1] %vm598, 0.0
        %619 = vst.msk [vmem:[#allocation2 + $0x41] sm:$0x1] %vm598, 0.0
        %620 = vst.msk [vmem:[#allocation2 + $0x59] sm:$0x1] %vm598, 0.0
        %621 = vst.msk [vmem:[#allocation2 + $0x71] sm:$0x1] %vm598, 0.0
        %622 = vst.msk [vmem:[#allocation2 + $0x89] sm:$0x1] %vm598, 0.0
        %623 = vst.msk [vmem:[#allocation2 + $0xa1] sm:$0x1] %vm598, 0.0
        %624 = vst.msk [vmem:[#allocation2 + $0xb9] sm:$0x1] %vm598, 0.0
        %625 = vst.msk [vmem:[#allocation2 + $0xd1] sm:$0x1] %vm598, 0.0
        %626 = vst.msk [vmem:[#allocation2 + $0xe9] sm:$0x1] %vm598, 0.0
        %627 = vst.msk [vmem:[#allocation2 + $0x101] sm:$0x1] %vm598, 0.0
        %628 = vst.msk [vmem:[#allocation2 + $0x119] sm:$0x1] %vm598, 0.0
        %629 = vst.msk [vmem:[#allocation2 + $0x131] sm:$0x1] %vm598, 0.0
        %630 = vst.msk [vmem:[#allocation2 + $0x149] sm:$0x1] %vm598, 0.0
        %631 = vst.msk [vmem:[#allocation2 + $0x161] sm:$0x1] %vm598, 0.0
        %632 = vst.msk [vmem:[#allocation2 + $0x179] sm:$0x1] %vm598, 0.0
        %633 = vst.msk [vmem:[#allocation2 + $0x191] sm:$0x1] %vm598, 0.0
        %634 = vst.msk [vmem:[#allocation2 + $0x1a9] sm:$0x1] %vm598, 0.0
        %s635 = scalar_lea.vmem [#allocation2], 24
        %636 = vst.msk [vmem:[%s635 + $0x1] sm:$0xff] %vm589, %v557
        %637 = vst.msk [vmem:[%s635 + $0x9] sm:$0xff] %vm589, %v558
        %638 = vst.msk [vmem:[%s635 + $0x19] sm:$0xff] %vm589, %v559
        %639 = vst.msk [vmem:[%s635 + $0x21] sm:$0xff] %vm589, %v560
        %640 = vst.msk [vmem:[%s635 + $0x31] sm:$0xff] %vm589, %v561
        %641 = vst.msk [vmem:[%s635 + $0x39] sm:$0xff] %vm589, %v562
        %642 = vst.msk [vmem:[%s635 + $0x49] sm:$0xff] %vm589, %v563
        %643 = vst.msk [vmem:[%s635 + $0x51] sm:$0xff] %vm589, %v564
        %644 = vst.msk [vmem:[%s635 + $0x61] sm:$0xff] %vm589, %v565
        %645 = vst.msk [vmem:[%s635 + $0x69] sm:$0xff] %vm589, %v566
        %646 = vst.msk [vmem:[%s635 + $0x79] sm:$0xff] %vm589, %v567
        %647 = vst.msk [vmem:[%s635 + $0x81] sm:$0xff] %vm589, %v568
        %648 = vst.msk [vmem:[%s635 + $0x91] sm:$0xff] %vm589, %v569
        %649 = vst.msk [vmem:[%s635 + $0x99] sm:$0xff] %vm589, %v570
        %650 = vst.msk [vmem:[%s635 + $0xa9] sm:$0xff] %vm589, %v571
        %651 = vst.msk [vmem:[%s635 + $0xb1] sm:$0xff] %vm589, %v572
        %652 = vst.msk [vmem:[%s635 + $0xc1] sm:$0xff] %vm589, %v573
        %653 = vst.msk [vmem:[%s635 + $0xc9] sm:$0xff] %vm589, %v574
        %654 = vst.msk [vmem:[%s635 + $0xd9] sm:$0xff] %vm589, %v575
        %655 = vst.msk [vmem:[%s635 + $0xe1] sm:$0xff] %vm589, %v576
        %656 = vst.msk [vmem:[%s635 + $0xf1] sm:$0xff] %vm589, %v577
        %657 = vst.msk [vmem:[%s635 + $0xf9] sm:$0xff] %vm589, %v578
        %658 = vst.msk [vmem:[%s635 + $0x109] sm:$0xff] %vm589, %v579
        %659 = vst.msk [vmem:[%s635 + $0x111] sm:$0xff] %vm589, %v580
        %660 = vst.msk [vmem:[%s635 + $0x121] sm:$0xff] %vm589, %v581
        %661 = vst.msk [vmem:[%s635 + $0x129] sm:$0xff] %vm589, %v582
        %662 = vst.msk [vmem:[%s635 + $0x139] sm:$0xff] %vm589, %v583
        %663 = vst.msk [vmem:[%s635 + $0x141] sm:$0xff] %vm589, %v584
        %664 = vst.msk [vmem:[%s635 + $0x151] sm:$0xff] %vm589, %v585
        %665 = vst.msk [vmem:[%s635 + $0x159] sm:$0xff] %vm589, %v586
        %666 = vst.msk [vmem:[%s635 + $0x169] sm:$0xff] %vm589, %v587
        %667 = vst.msk [vmem:[%s635 + $0x171] sm:$0xff] %vm589, %v588
        %v668 = vld [vmem:[#allocation2] sm:$0xff]
        %v669 = vld [vmem:[#allocation2 + $0x8] sm:$0xff]
        %v670 = vld [vmem:[#allocation2 + $0x18] sm:$0xff]
        %v671 = vld [vmem:[#allocation2 + $0x20] sm:$0xff]
        %v672 = vld [vmem:[#allocation2 + $0x30] sm:$0xff]
        %v673 = vld [vmem:[#allocation2 + $0x38] sm:$0xff]
        %v674 = vld [vmem:[#allocation2 + $0x48] sm:$0xff]
        %v675 = vld [vmem:[#allocation2 + $0x50] sm:$0xff]
        %v676 = vld [vmem:[#allocation2 + $0x60] sm:$0xff]
        %v677 = vld [vmem:[#allocation2 + $0x68] sm:$0xff]
        %v678 = vld [vmem:[#allocation2 + $0x78] sm:$0xff]
        %v679 = vld [vmem:[#allocation2 + $0x80] sm:$0xff]
        %v680 = vld [vmem:[#allocation2 + $0x90] sm:$0xff]
        %v681 = vld [vmem:[#allocation2 + $0x98] sm:$0xff]
        %v682 = vld [vmem:[#allocation2 + $0xa8] sm:$0xff]
        %v683 = vld [vmem:[#allocation2 + $0xb0] sm:$0xff]
        %v684 = vld [vmem:[#allocation2 + $0xc0] sm:$0xff]
        %v685 = vld [vmem:[#allocation2 + $0xc8] sm:$0xff]
        %v686 = vld [vmem:[#allocation2 + $0xd8] sm:$0xff]
        %v687 = vld [vmem:[#allocation2 + $0xe0] sm:$0xff]
        %v688 = vld [vmem:[#allocation2 + $0xf0] sm:$0xff]
        %v689 = vld [vmem:[#allocation2 + $0xf8] sm:$0xff]
        %v690 = vld [vmem:[#allocation2 + $0x108] sm:$0xff]
        %v691 = vld [vmem:[#allocation2 + $0x110] sm:$0xff]
        %v692 = vld [vmem:[#allocation2 + $0x120] sm:$0xff]
        %v693 = vld [vmem:[#allocation2 + $0x128] sm:$0xff]
        %v694 = vld [vmem:[#allocation2 + $0x138] sm:$0xff]
        %v695 = vld [vmem:[#allocation2 + $0x140] sm:$0xff]
        %v696 = vld [vmem:[#allocation2 + $0x150] sm:$0xff]
        %v697 = vld [vmem:[#allocation2 + $0x158] sm:$0xff]
        %v698 = vld [vmem:[#allocation2 + $0x168] sm:$0xff]
        %v699 = vld [vmem:[#allocation2 + $0x170] sm:$0xff]
        %v700 = vld [vmem:[#allocation2 + $0x180] sm:$0xff]
        %v701 = vld [vmem:[#allocation2 + $0x188] sm:$0xff]
        %v702 = vld [vmem:[#allocation2 + $0x198] sm:$0xff]
        %v703 = vld [vmem:[#allocation2 + $0x1a0] sm:$0xff]
        %v704 = vld [vmem:[#allocation2 + $0x1] sm:$0xff]
        %v705 = vld [vmem:[#allocation2 + $0x9] sm:$0xff]
        %v706 = vld [vmem:[#allocation2 + $0x19] sm:$0xff]
        %v707 = vld [vmem:[#allocation2 + $0x21] sm:$0xff]
        %v708 = vld [vmem:[#allocation2 + $0x31] sm:$0xff]
        %v709 = vld [vmem:[#allocation2 + $0x39] sm:$0xff]
        %v710 = vld [vmem:[#allocation2 + $0x49] sm:$0xff]
        %v711 = vld [vmem:[#allocation2 + $0x51] sm:$0xff]
        %v712 = vld [vmem:[#allocation2 + $0x61] sm:$0xff]
        %v713 = vld [vmem:[#allocation2 + $0x69] sm:$0xff]
        %v714 = vld [vmem:[#allocation2 + $0x79] sm:$0xff]
        %v715 = vld [vmem:[#allocation2 + $0x81] sm:$0xff]
        %v716 = vld [vmem:[#allocation2 + $0x91] sm:$0xff]
        %v717 = vld [vmem:[#allocation2 + $0x99] sm:$0xff]
        %v718 = vld [vmem:[#allocation2 + $0xa9] sm:$0xff]
        %v719 = vld [vmem:[#allocation2 + $0xb1] sm:$0xff]
        %v720 = vld [vmem:[#allocation2 + $0xc1] sm:$0xff]
        %v721 = vld [vmem:[#allocation2 + $0xc9] sm:$0xff]
        %v722 = vld [vmem:[#allocation2 + $0xd9] sm:$0xff]
        %v723 = vld [vmem:[#allocation2 + $0xe1] sm:$0xff]
        %v724 = vld [vmem:[#allocation2 + $0xf1] sm:$0xff]
        %v725 = vld [vmem:[#allocation2 + $0xf9] sm:$0xff]
        %v726 = vld [vmem:[#allocation2 + $0x109] sm:$0xff]
        %v727 = vld [vmem:[#allocation2 + $0x111] sm:$0xff]
        %v728 = vld [vmem:[#allocation2 + $0x121] sm:$0xff]
        %v729 = vld [vmem:[#allocation2 + $0x129] sm:$0xff]
        %v730 = vld [vmem:[#allocation2 + $0x139] sm:$0xff]
        %v731 = vld [vmem:[#allocation2 + $0x141] sm:$0xff]
        %v732 = vld [vmem:[#allocation2 + $0x151] sm:$0xff]
        %v733 = vld [vmem:[#allocation2 + $0x159] sm:$0xff]
        %v734 = vld [vmem:[#allocation2 + $0x169] sm:$0xff]
        %v735 = vld [vmem:[#allocation2 + $0x171] sm:$0xff]
        %v736 = vld [vmem:[#allocation2 + $0x181] sm:$0xff]
        %v737 = vld [vmem:[#allocation2 + $0x189] sm:$0xff]
        %v738 = vld [vmem:[#allocation2 + $0x199] sm:$0xff]
        %v739 = vld [vmem:[#allocation2 + $0x1a1] sm:$0xff]
        %v740 = vld [vmem:[#allocation2 + $0x2] sm:$0xff]
        %v741 = vld [vmem:[#allocation2 + $0xa] sm:$0xff]
        %v742 = vld [vmem:[#allocation2 + $0x1a] sm:$0xff]
        %v743 = vld [vmem:[#allocation2 + $0x22] sm:$0xff]
        %v744 = vld [vmem:[#allocation2 + $0x32] sm:$0xff]
        %v745 = vld [vmem:[#allocation2 + $0x3a] sm:$0xff]
        %v746 = vld [vmem:[#allocation2 + $0x4a] sm:$0xff]
        %v747 = vld [vmem:[#allocation2 + $0x52] sm:$0xff]
        %v748 = vld [vmem:[#allocation2 + $0x62] sm:$0xff]
        %v749 = vld [vmem:[#allocation2 + $0x6a] sm:$0xff]
        %v750 = vld [vmem:[#allocation2 + $0x7a] sm:$0xff]
        %v751 = vld [vmem:[#allocation2 + $0x82] sm:$0xff]
        %v752 = vld [vmem:[#allocation2 + $0x92] sm:$0xff]
        %v753 = vld [vmem:[#allocation2 + $0x9a] sm:$0xff]
        %v754 = vld [vmem:[#allocation2 + $0xaa] sm:$0xff]
        %v755 = vld [vmem:[#allocation2 + $0xb2] sm:$0xff]
        %v756 = vld [vmem:[#allocation2 + $0xc2] sm:$0xff]
        %v757 = vld [vmem:[#allocation2 + $0xca] sm:$0xff]
        %v758 = vld [vmem:[#allocation2 + $0xda] sm:$0xff]
        %v759 = vld [vmem:[#allocation2 + $0xe2] sm:$0xff]
        %v760 = vld [vmem:[#allocation2 + $0xf2] sm:$0xff]
        %v761 = vld [vmem:[#allocation2 + $0xfa] sm:$0xff]
        %v762 = vld [vmem:[#allocation2 + $0x10a] sm:$0xff]
        %v763 = vld [vmem:[#allocation2 + $0x112] sm:$0xff]
        %v764 = vld [vmem:[#allocation2 + $0x122] sm:$0xff]
        %v765 = vld [vmem:[#allocation2 + $0x12a] sm:$0xff]
        %v766 = vld [vmem:[#allocation2 + $0x13a] sm:$0xff]
        %v767 = vld [vmem:[#allocation2 + $0x142] sm:$0xff]
        %v768 = vld [vmem:[#allocation2 + $0x152] sm:$0xff]
        %v769 = vld [vmem:[#allocation2 + $0x15a] sm:$0xff]
        %v770 = vld [vmem:[#allocation2 + $0x16a] sm:$0xff]
        %v771 = vld [vmem:[#allocation2 + $0x172] sm:$0xff]
        %v772 = vld [vmem:[#allocation2 + $0x182] sm:$0xff]
        %v773 = vld [vmem:[#allocation2 + $0x18a] sm:$0xff]
        %v774 = vld [vmem:[#allocation2 + $0x19a] sm:$0xff]
        %v775 = vld [vmem:[#allocation2 + $0x1a2] sm:$0xff]
        %812 = vrot.lane.b32.xlu0 %v704, 32
        %v813 = vpop.permute.xlu0 %812
        %814 = vrot.lane.b32.xlu0 %v705, 32
        %v815 = vpop.permute.xlu0 %814
        %816 = vrot.lane.b32.xlu0 %v706, 32
        %v817 = vpop.permute.xlu0 %816
        %818 = vrot.lane.b32.xlu0 %v707, 32
        %v819 = vpop.permute.xlu0 %818
        %820 = vrot.lane.b32.xlu0 %v708, 32
        %v821 = vpop.permute.xlu0 %820
        %822 = vrot.lane.b32.xlu0 %v709, 32
        %v823 = vpop.permute.xlu0 %822
        %824 = vrot.lane.b32.xlu0 %v710, 32
        %v825 = vpop.permute.xlu0 %824
        %826 = vrot.lane.b32.xlu0 %v711, 32
        %v827 = vpop.permute.xlu0 %826
        %828 = vrot.lane.b32.xlu0 %v712, 32
        %v829 = vpop.permute.xlu0 %828
        %830 = vrot.lane.b32.xlu0 %v713, 32
        %v831 = vpop.permute.xlu0 %830
        %832 = vrot.lane.b32.xlu0 %v714, 32
        %v833 = vpop.permute.xlu0 %832
        %834 = vrot.lane.b32.xlu0 %v715, 32
        %v835 = vpop.permute.xlu0 %834
        %836 = vrot.lane.b32.xlu0 %v716, 32
        %v837 = vpop.permute.xlu0 %836
        %838 = vrot.lane.b32.xlu0 %v717, 32
        %v839 = vpop.permute.xlu0 %838
        %840 = vrot.lane.b32.xlu0 %v718, 32
        %v841 = vpop.permute.xlu0 %840
        %842 = vrot.lane.b32.xlu0 %v719, 32
        %v843 = vpop.permute.xlu0 %842
        %844 = vrot.lane.b32.xlu0 %v720, 32
        %v845 = vpop.permute.xlu0 %844
        %846 = vrot.lane.b32.xlu0 %v721, 32
        %v847 = vpop.permute.xlu0 %846
        %848 = vrot.lane.b32.xlu0 %v722, 32
        %v849 = vpop.permute.xlu0 %848
        %850 = vrot.lane.b32.xlu0 %v723, 32
        %v851 = vpop.permute.xlu0 %850
        %852 = vrot.lane.b32.xlu0 %v724, 32
        %v853 = vpop.permute.xlu0 %852
        %854 = vrot.lane.b32.xlu0 %v725, 32
        %v855 = vpop.permute.xlu0 %854
        %856 = vrot.lane.b32.xlu0 %v726, 32
        %v857 = vpop.permute.xlu0 %856
        %858 = vrot.lane.b32.xlu0 %v727, 32
        %v859 = vpop.permute.xlu0 %858
        %860 = vrot.lane.b32.xlu0 %v728, 32
        %v861 = vpop.permute.xlu0 %860
        %862 = vrot.lane.b32.xlu0 %v729, 32
        %v863 = vpop.permute.xlu0 %862
        %864 = vrot.lane.b32.xlu0 %v730, 32
        %v865 = vpop.permute.xlu0 %864
        %866 = vrot.lane.b32.xlu0 %v731, 32
        %v867 = vpop.permute.xlu0 %866
        %868 = vrot.lane.b32.xlu0 %v732, 32
        %v869 = vpop.permute.xlu0 %868
        %870 = vrot.lane.b32.xlu0 %v733, 32
        %v871 = vpop.permute.xlu0 %870
        %872 = vrot.lane.b32.xlu0 %v734, 32
        %v873 = vpop.permute.xlu0 %872
        %874 = vrot.lane.b32.xlu0 %v735, 32
        %v875 = vpop.permute.xlu0 %874
        %876 = vrot.lane.b32.xlu0 %v736, 32
        %v877 = vpop.permute.xlu0 %876
        %878 = vrot.lane.b32.xlu0 %v737, 32
        %v879 = vpop.permute.xlu0 %878
        %880 = vrot.lane.b32.xlu0 %v738, 32
        %v881 = vpop.permute.xlu0 %880
        %882 = vrot.lane.b32.xlu0 %v739, 32
        %v883 = vpop.permute.xlu0 %882
        %956 = vrot.lane.b32.xlu0 %v740, 64
        %v957 = vpop.permute.xlu0 %956
        %958 = vrot.lane.b32.xlu0 %v741, 64
        %v959 = vpop.permute.xlu0 %958
        %960 = vrot.lane.b32.xlu0 %v742, 64
        %v961 = vpop.permute.xlu0 %960
        %962 = vrot.lane.b32.xlu0 %v743, 64
        %v963 = vpop.permute.xlu0 %962
        %964 = vrot.lane.b32.xlu0 %v744, 64
        %v965 = vpop.permute.xlu0 %964
        %966 = vrot.lane.b32.xlu0 %v745, 64
        %v967 = vpop.permute.xlu0 %966
        %968 = vrot.lane.b32.xlu0 %v746, 64
        %v969 = vpop.permute.xlu0 %968
        %970 = vrot.lane.b32.xlu0 %v747, 64
        %v971 = vpop.permute.xlu0 %970
        %972 = vrot.lane.b32.xlu0 %v748, 64
        %v973 = vpop.permute.xlu0 %972
        %974 = vrot.lane.b32.xlu0 %v749, 64
        %v975 = vpop.permute.xlu0 %974
        %976 = vrot.lane.b32.xlu0 %v750, 64
        %v977 = vpop.permute.xlu0 %976
        %978 = vrot.lane.b32.xlu0 %v751, 64
        %v979 = vpop.permute.xlu0 %978
        %980 = vrot.lane.b32.xlu0 %v752, 64
        %v981 = vpop.permute.xlu0 %980
        %982 = vrot.lane.b32.xlu0 %v753, 64
        %v983 = vpop.permute.xlu0 %982
        %984 = vrot.lane.b32.xlu0 %v754, 64
        %v985 = vpop.permute.xlu0 %984
        %986 = vrot.lane.b32.xlu0 %v755, 64
        %v987 = vpop.permute.xlu0 %986
        %988 = vrot.lane.b32.xlu0 %v756, 64
        %v989 = vpop.permute.xlu0 %988
        %990 = vrot.lane.b32.xlu0 %v757, 64
        %v991 = vpop.permute.xlu0 %990
        %992 = vrot.lane.b32.xlu0 %v758, 64
        %v993 = vpop.permute.xlu0 %992
        %994 = vrot.lane.b32.xlu0 %v759, 64
        %v995 = vpop.permute.xlu0 %994
        %996 = vrot.lane.b32.xlu0 %v760, 64
        %v997 = vpop.permute.xlu0 %996
        %998 = vrot.lane.b32.xlu0 %v761, 64
        %v999 = vpop.permute.xlu0 %998
        %1000 = vrot.lane.b32.xlu0 %v762, 64
        %v1001 = vpop.permute.xlu0 %1000
        %1002 = vrot.lane.b32.xlu0 %v763, 64
        %v1003 = vpop.permute.xlu0 %1002
        %1004 = vrot.lane.b32.xlu0 %v764, 64
        %v1005 = vpop.permute.xlu0 %1004
        %1006 = vrot.lane.b32.xlu0 %v765, 64
        %v1007 = vpop.permute.xlu0 %1006
        %1008 = vrot.lane.b32.xlu0 %v766, 64
        %v1009 = vpop.permute.xlu0 %1008
        %1010 = vrot.lane.b32.xlu0 %v767, 64
        %v1011 = vpop.permute.xlu0 %1010
        %1012 = vrot.lane.b32.xlu0 %v768, 64
        %v1013 = vpop.permute.xlu0 %1012
        %1014 = vrot.lane.b32.xlu0 %v769, 64
        %v1015 = vpop.permute.xlu0 %1014
        %1016 = vrot.lane.b32.xlu0 %v770, 64
        %v1017 = vpop.permute.xlu0 %1016
        %1018 = vrot.lane.b32.xlu0 %v771, 64
        %v1019 = vpop.permute.xlu0 %1018
        %1020 = vrot.lane.b32.xlu0 %v772, 64
        %v1021 = vpop.permute.xlu0 %1020
        %1022 = vrot.lane.b32.xlu0 %v773, 64
        %v1023 = vpop.permute.xlu0 %1022
        %1024 = vrot.lane.b32.xlu0 %v774, 64
        %v1025 = vpop.permute.xlu0 %1024
        %1026 = vrot.lane.b32.xlu0 %v775, 64
        %v1027 = vpop.permute.xlu0 %1026
        %v1064 = vsel %vm589, %v668, %v813
        %v1065 = vsel %vm589, %v669, %v815
        %v1066 = vsel %vm589, %v670, %v817
        %v1067 = vsel %vm589, %v671, %v819
        %v1068 = vsel %vm589, %v672, %v821
        %v1069 = vsel %vm589, %v673, %v823
        %v1070 = vsel %vm589, %v674, %v825
        %v1071 = vsel %vm589, %v675, %v827
        %v1072 = vsel %vm589, %v676, %v829
        %v1073 = vsel %vm589, %v677, %v831
        %v1074 = vsel %vm589, %v678, %v833
        %v1075 = vsel %vm589, %v679, %v835
        %v1076 = vsel %vm589, %v680, %v837
        %v1077 = vsel %vm589, %v681, %v839
        %v1078 = vsel %vm589, %v682, %v841
        %v1079 = vsel %vm589, %v683, %v843
        %v1080 = vsel %vm589, %v684, %v845
        %v1081 = vsel %vm589, %v685, %v847
        %v1082 = vsel %vm589, %v686, %v849
        %v1083 = vsel %vm589, %v687, %v851
        %v1084 = vsel %vm589, %v688, %v853
        %v1085 = vsel %vm589, %v689, %v855
        %v1086 = vsel %vm589, %v690, %v857
        %v1087 = vsel %vm589, %v691, %v859
        %v1088 = vsel %vm589, %v692, %v861
        %v1089 = vsel %vm589, %v693, %v863
        %v1090 = vsel %vm589, %v694, %v865
        %v1091 = vsel %vm589, %v695, %v867
        %v1092 = vsel %vm589, %v696, %v869
        %v1093 = vsel %vm589, %v697, %v871
        %v1094 = vsel %vm589, %v698, %v873
        %v1095 = vsel %vm589, %v699, %v875
        %v1096 = vsel %vm589, %v700, %v877
        %v1097 = vsel %vm589, %v701, %v879
        %v1098 = vsel %vm589, %v702, %v881
        %v1099 = vsel %vm589, %v703, %v883
        %vm1100 = vcmask 523264
        %v1101 = vsel %vm1100, %v1064, %v957
        %v1102 = vsel %vm1100, %v1065, %v959
        %v1103 = vsel %vm1100, %v1066, %v961
        %v1104 = vsel %vm1100, %v1067, %v963
        %v1105 = vsel %vm1100, %v1068, %v965
        %v1106 = vsel %vm1100, %v1069, %v967
        %v1107 = vsel %vm1100, %v1070, %v969
        %v1108 = vsel %vm1100, %v1071, %v971
        %v1109 = vsel %vm1100, %v1072, %v973
        %v1110 = vsel %vm1100, %v1073, %v975
        %v1111 = vsel %vm1100, %v1074, %v977
        %v1112 = vsel %vm1100, %v1075, %v979
        %v1113 = vsel %vm1100, %v1076, %v981
        %v1114 = vsel %vm1100, %v1077, %v983
        %v1115 = vsel %vm1100, %v1078, %v985
        %v1116 = vsel %vm1100, %v1079, %v987
        %v1117 = vsel %vm1100, %v1080, %v989
        %v1118 = vsel %vm1100, %v1081, %v991
        %v1119 = vsel %vm1100, %v1082, %v993
        %v1120 = vsel %vm1100, %v1083, %v995
        %v1121 = vsel %vm1100, %v1084, %v997
        %v1122 = vsel %vm1100, %v1085, %v999
        %v1123 = vsel %vm1100, %v1086, %v1001
        %v1124 = vsel %vm1100, %v1087, %v1003
        %v1125 = vsel %vm1100, %v1088, %v1005
        %v1126 = vsel %vm1100, %v1089, %v1007
        %v1127 = vsel %vm1100, %v1090, %v1009
        %v1128 = vsel %vm1100, %v1091, %v1011
        %v1129 = vsel %vm1100, %v1092, %v1013
        %v1130 = vsel %vm1100, %v1093, %v1015
        %v1131 = vsel %vm1100, %v1094, %v1017
        %v1132 = vsel %vm1100, %v1095, %v1019
        %v1133 = vsel %vm1100, %v1096, %v1021
        %v1134 = vsel %vm1100, %v1097, %v1023
        %v1135 = vsel %vm1100, %v1098, %v1025
        %v1136 = vsel %vm1100, %v1099, %v1027
        %vm1137 = vcmask 785408
        %1138 = vst.msk [vmem:[#allocation3] sm:$0xff] %vm1137, %v1101
        %1139 = vst.msk [vmem:[#allocation3 + $0x8] sm:$0xff] %vm1137, %v1102
        %1140 = vst.msk [vmem:[#allocation3 + $0x10] sm:$0xff] %vm1137, %v1103
        %1141 = vst.msk [vmem:[#allocation3 + $0x18] sm:$0xff] %vm1137, %v1104
        %1142 = vst.msk [vmem:[#allocation3 + $0x20] sm:$0xff] %vm1137, %v1105
        %1143 = vst.msk [vmem:[#allocation3 + $0x28] sm:$0xff] %vm1137, %v1106
        %1144 = vst.msk [vmem:[#allocation3 + $0x30] sm:$0xff] %vm1137, %v1107
        %1145 = vst.msk [vmem:[#allocation3 + $0x38] sm:$0xff] %vm1137, %v1108
        %1146 = vst.msk [vmem:[#allocation3 + $0x40] sm:$0xff] %vm1137, %v1109
        %1147 = vst.msk [vmem:[#allocation3 + $0x48] sm:$0xff] %vm1137, %v1110
        %1148 = vst.msk [vmem:[#allocation3 + $0x50] sm:$0xff] %vm1137, %v1111
        %1149 = vst.msk [vmem:[#allocation3 + $0x58] sm:$0xff] %vm1137, %v1112
        %1150 = vst.msk [vmem:[#allocation3 + $0x60] sm:$0xff] %vm1137, %v1113
        %1151 = vst.msk [vmem:[#allocation3 + $0x68] sm:$0xff] %vm1137, %v1114
        %1152 = vst.msk [vmem:[#allocation3 + $0x70] sm:$0xff] %vm1137, %v1115
        %1153 = vst.msk [vmem:[#allocation3 + $0x78] sm:$0xff] %vm1137, %v1116
        %1154 = vst.msk [vmem:[#allocation3 + $0x80] sm:$0xff] %vm1137, %v1117
        %1155 = vst.msk [vmem:[#allocation3 + $0x88] sm:$0xff] %vm1137, %v1118
        %1156 = vst.msk [vmem:[#allocation3 + $0x90] sm:$0xff] %vm1137, %v1119
        %1157 = vst.msk [vmem:[#allocation3 + $0x98] sm:$0xff] %vm1137, %v1120
        %1158 = vst.msk [vmem:[#allocation3 + $0xa0] sm:$0xff] %vm1137, %v1121
        %1159 = vst.msk [vmem:[#allocation3 + $0xa8] sm:$0xff] %vm1137, %v1122
        %1160 = vst.msk [vmem:[#allocation3 + $0xb0] sm:$0xff] %vm1137, %v1123
        %1161 = vst.msk [vmem:[#allocation3 + $0xb8] sm:$0xff] %vm1137, %v1124
        %1162 = vst.msk [vmem:[#allocation3 + $0xc0] sm:$0xff] %vm1137, %v1125
        %1163 = vst.msk [vmem:[#allocation3 + $0xc8] sm:$0xff] %vm1137, %v1126
        %1164 = vst.msk [vmem:[#allocation3 + $0xd0] sm:$0xff] %vm1137, %v1127
        %1165 = vst.msk [vmem:[#allocation3 + $0xd8] sm:$0xff] %vm1137, %v1128
        %1166 = vst.msk [vmem:[#allocation3 + $0xe0] sm:$0xff] %vm1137, %v1129
        %1167 = vst.msk [vmem:[#allocation3 + $0xe8] sm:$0xff] %vm1137, %v1130
        %1168 = vst.msk [vmem:[#allocation3 + $0xf0] sm:$0xff] %vm1137, %v1131
        %1169 = vst.msk [vmem:[#allocation3 + $0xf8] sm:$0xff] %vm1137, %v1132
        %1170 = vst.msk [vmem:[#allocation3 + $0x100] sm:$0xff] %vm1137, %v1133
        %1171 = vst.msk [vmem:[#allocation3 + $0x108] sm:$0xff] %vm1137, %v1134
        %1172 = vst.msk [vmem:[#allocation3 + $0x110] sm:$0xff] %vm1137, %v1135
        %1173 = vst.msk [vmem:[#allocation3 + $0x118] sm:$0xff] %vm1137, %v1136
        %v1174 = vld [vmem:[#allocation3] sm:$0xff]
        %v1175 = vld [vmem:[#allocation3 + $0x8] sm:$0xff]
        %v1176 = vld [vmem:[#allocation3 + $0x10] sm:$0xff]
        %v1177 = vld [vmem:[#allocation3 + $0x18] sm:$0xff]
        %v1178 = vld [vmem:[#allocation3 + $0x20] sm:$0xff]
        %v1179 = vld [vmem:[#allocation3 + $0x28] sm:$0xff]
        %v1180 = vld [vmem:[#allocation3 + $0x30] sm:$0xff]
        %v1181 = vld [vmem:[#allocation3 + $0x38] sm:$0xff]
        %v1182 = vld [vmem:[#allocation3 + $0x40] sm:$0xff]
        %v1183 = vld [vmem:[#allocation3 + $0x48] sm:$0xff]
        %v1184 = vld [vmem:[#allocation3 + $0x50] sm:$0xff]
        %v1185 = vld [vmem:[#allocation3 + $0x58] sm:$0xff]
        %v1186 = vld [vmem:[#allocation3 + $0x60] sm:$0xff]
        %v1187 = vld [vmem:[#allocation3 + $0x68] sm:$0xff]
        %v1188 = vld [vmem:[#allocation3 + $0x70] sm:$0xff]
        %v1189 = vld [vmem:[#allocation3 + $0x78] sm:$0xff]
        %v1190 = vld [vmem:[#allocation3 + $0x80] sm:$0xff]
        %v1191 = vld [vmem:[#allocation3 + $0x88] sm:$0xff]
        %v1192 = vld [vmem:[#allocation3 + $0x90] sm:$0xff]
        %v1193 = vld [vmem:[#allocation3 + $0x98] sm:$0xff]
        %v1194 = vld [vmem:[#allocation3 + $0xa0] sm:$0xff]
        %v1195 = vld [vmem:[#allocation3 + $0xa8] sm:$0xff]
        %v1196 = vld [vmem:[#allocation3 + $0xb0] sm:$0xff]
        %v1197 = vld [vmem:[#allocation3 + $0xb8] sm:$0xff]
        %v1198 = vld [vmem:[#allocation3 + $0xc0] sm:$0xff]
        %v1199 = vld [vmem:[#allocation3 + $0xc8] sm:$0xff]
        %v1200 = vld [vmem:[#allocation3 + $0xd0] sm:$0xff]
        %v1201 = vld [vmem:[#allocation3 + $0xd8] sm:$0xff]
        %v1202 = vld [vmem:[#allocation3 + $0xe0] sm:$0xff]
        %v1203 = vld [vmem:[#allocation3 + $0xe8] sm:$0xff]
        %v1204 = vld [vmem:[#allocation3 + $0xf0] sm:$0xff]
        %v1205 = vld [vmem:[#allocation3 + $0xf8] sm:$0xff]
        %v1206 = vld [vmem:[%s2] sm:$0xff]
        %v1207 = vld [vmem:[%s2 + $0x8] sm:$0xff]
        %v1208 = vld [vmem:[%s2 + $0x10] sm:$0xff]
        %v1209 = vld [vmem:[%s2 + $0x18] sm:$0xff]
        %v1210 = vld [vmem:[%s2 + $0x20] sm:$0xff]
        %v1211 = vld [vmem:[%s2 + $0x28] sm:$0xff]
        %v1212 = vld [vmem:[%s2 + $0x30] sm:$0xff]
        %v1213 = vld [vmem:[%s2 + $0x38] sm:$0xff]
        %v1214 = vld [vmem:[%s2 + $0x40] sm:$0xff]
        %v1215 = vld [vmem:[%s2 + $0x48] sm:$0xff]
        %v1216 = vld [vmem:[%s2 + $0x50] sm:$0xff]
        %v1217 = vld [vmem:[%s2 + $0x58] sm:$0xff]
        %s1218 = scalar_lea.vmem [#allocation3], 16
        %v1219 = vld [vmem:[%s1218] sm:$0xff]
        %v1220 = vld [vmem:[%s1218 + $0x8] sm:$0xff]
        %v1221 = vld [vmem:[%s1218 + $0x10] sm:$0xff]
        %v1222 = vld [vmem:[%s1218 + $0x18] sm:$0xff]
        %v1223 = vld [vmem:[%s1218 + $0x20] sm:$0xff]
        %v1224 = vld [vmem:[%s1218 + $0x28] sm:$0xff]
        %v1225 = vld [vmem:[%s1218 + $0x30] sm:$0xff]
        %v1226 = vld [vmem:[%s1218 + $0x38] sm:$0xff]
        %v1227 = vld [vmem:[%s1218 + $0x40] sm:$0xff]
        %v1228 = vld [vmem:[%s1218 + $0x48] sm:$0xff]
        %v1229 = vld [vmem:[%s1218 + $0x50] sm:$0xff]
        %v1230 = vld [vmem:[%s1218 + $0x58] sm:$0xff]
        %v1231 = vld [vmem:[%s1218 + $0x60] sm:$0xff]
        %v1232 = vld [vmem:[%s1218 + $0x68] sm:$0xff]
        %v1233 = vld [vmem:[%s1218 + $0x70] sm:$0xff]
        %v1234 = vld [vmem:[%s1218 + $0x78] sm:$0xff]
        %v1235 = vld [vmem:[%s1218 + $0x80] sm:$0xff]
        %v1236 = vld [vmem:[%s1218 + $0x88] sm:$0xff]
        %v1237 = vld [vmem:[%s1218 + $0x90] sm:$0xff]
        %v1238 = vld [vmem:[%s1218 + $0x98] sm:$0xff]
        %v1239 = vld [vmem:[%s1218 + $0xa0] sm:$0xff]
        %v1240 = vld [vmem:[%s1218 + $0xa8] sm:$0xff]
        %v1241 = vld [vmem:[%s1218 + $0xb0] sm:$0xff]
        %v1242 = vld [vmem:[%s1218 + $0xb8] sm:$0xff]
        %v1243 = vld [vmem:[%s1218 + $0xc0] sm:$0xff]
        %v1244 = vld [vmem:[%s1218 + $0xc8] sm:$0xff]
        %v1245 = vld [vmem:[%s1218 + $0xd0] sm:$0xff]
        %v1246 = vld [vmem:[%s1218 + $0xd8] sm:$0xff]
        %v1247 = vld [vmem:[%s1218 + $0xe0] sm:$0xff]
        %v1248 = vld [vmem:[%s1218 + $0xe8] sm:$0xff]
        %v1249 = vld [vmem:[%s1218 + $0xf0] sm:$0xff]
        %v1250 = vld [vmem:[%s1218 + $0xf8] sm:$0xff]
        %s1251 = scalar_lea.vmem %s2, 96
        %v1252 = vld [vmem:[%s1251] sm:$0xff]
        %v1253 = vld [vmem:[%s1251 + $0x8] sm:$0xff]
        %v1254 = vld [vmem:[%s1251 + $0x10] sm:$0xff]
        %v1255 = vld [vmem:[%s1251 + $0x18] sm:$0xff]
        %v1256 = vld [vmem:[%s1251 + $0x20] sm:$0xff]
        %v1257 = vld [vmem:[%s1251 + $0x28] sm:$0xff]
        %v1258 = vld [vmem:[%s1251 + $0x30] sm:$0xff]
        %v1259 = vld [vmem:[%s1251 + $0x38] sm:$0xff]
        %v1260 = vld [vmem:[%s1251 + $0x40] sm:$0xff]
        %v1261 = vld [vmem:[%s1251 + $0x48] sm:$0xff]
        %v1262 = vld [vmem:[%s1251 + $0x50] sm:$0xff]
        %v1263 = vld [vmem:[%s1251 + $0x58] sm:$0xff]
        %v1265 = vsel %vm1137, %v1219, 0
        %v1268 = vsel %vm1137, %v1220, 0
        %v1271 = vsel %vm1137, %v1221, 0
        %v1274 = vsel %vm1137, %v1222, 0
        %v1277 = vsel %vm1137, %v1223, 0
        %v1280 = vsel %vm1137, %v1224, 0
        %v1283 = vsel %vm1137, %v1225, 0
        %v1286 = vsel %vm1137, %v1226, 0
        %v1289 = vsel %vm1137, %v1227, 0
        %v1292 = vsel %vm1137, %v1228, 0
        %v1295 = vsel %vm1137, %v1229, 0
        %v1298 = vsel %vm1137, %v1230, 0
        %v1301 = vsel %vm1137, %v1231, 0
        %v1304 = vsel %vm1137, %v1232, 0
        %v1307 = vsel %vm1137, %v1233, 0
        %v1310 = vsel %vm1137, %v1234, 0
        %v1313 = vsel %vm1137, %v1235, 0
        %v1316 = vsel %vm1137, %v1236, 0
        %v1319 = vsel %vm1137, %v1237, 0
        %v1322 = vsel %vm1137, %v1238, 0
        %v1325 = vsel %vm1137, %v1239, 0
        %v1328 = vsel %vm1137, %v1240, 0
        %v1331 = vsel %vm1137, %v1241, 0
        %v1334 = vsel %vm1137, %v1242, 0
        %v1337 = vsel %vm1137, %v1243, 0
        %v1340 = vsel %vm1137, %v1244, 0
        %v1343 = vsel %vm1137, %v1245, 0
        %v1346 = vsel %vm1137, %v1246, 0
        %v1349 = vsel %vm1137, %v1247, 0
        %v1352 = vsel %vm1137, %v1248, 0
        %v1355 = vsel %vm1137, %v1249, 0
        %v1358 = vsel %vm1137, %v1250, 0
        %1360 = vmatprep.subr.mxu0 0.0
        %1361 = vmatpush1.msra.mxu0 %v1252
        %1362 = vmatprep.subr.mxu0 0.0
        %1363 = vmatpush1.msra.mxu0 %v1253
        %1364 = vmatprep.subr.mxu0 0.0
        %1365 = vmatpush1.msra.mxu0 %v1254
        %1366 = vmatprep.subr.mxu0 0.0
        %1367 = vmatpush1.msra.mxu0 %v1255
        %1368 = vmatprep.subr.mxu0 0.0
        %1369 = vmatpush1.msra.mxu0 %v1256
        %1370 = vmatprep.subr.mxu0 0.0
        %1371 = vmatpush1.msra.mxu0 %v1257
        %1372 = vmatprep.subr.mxu0 0.0
        %1373 = vmatpush1.msra.mxu0 %v1258
        %1374 = vmatprep.subr.mxu0 0.0
        %1375 = vmatpush1.msra.mxu0 %v1259
        %1376 = vmatprep.subr.mxu0 0.0
        %1377 = vmatpush1.msra.mxu0 %v1260
        %1378 = vmatprep.subr.mxu0 0.0
        %1379 = vmatpush1.msra.mxu0 %v1261
        %1380 = vmatprep.subr.mxu0 0.0
        %1381 = vmatpush1.msra.mxu0 %v1262
        %1382 = vmatprep.subr.mxu0 0.0
        %1383 = vmatpush1.msra.mxu0 %v1263
        %1384 = vmatprep.subr.mxu0 0.0
        %1385 = vmatpush1.msra.mxu0 0.0
        %1386 = vmatprep.subr.mxu0 0.0
        %1387 = vmatpush1.msra.mxu0 0.0
        %1388 = vmatprep.subr.mxu0 0.0
        %1389 = vmatpush1.msra.mxu0 0.0
        %1390 = vmatprep.subr.mxu0 0.0
        %1391 = vmatpush1.msra.mxu0 0.0
        %1392 = vmatprep.subr.mxu0 0.0
        %1393 = vmatpush1.msra.mxu0 0.0
        %1394 = vmatprep.subr.mxu0 0.0
        %1395 = vmatpush1.msra.mxu0 0.0
        %1396 = vmatprep.subr.mxu0 0.0
        %1397 = vmatpush1.msra.mxu0 0.0
        %1398 = vmatprep.subr.mxu0 0.0
        %1399 = vmatpush1.msra.mxu0 0.0
        %1400 = vmatprep.subr.mxu0 0.0
        %1401 = vmatpush1.msra.mxu0 0.0
        %1402 = vmatprep.subr.mxu0 0.0
        %1403 = vmatpush1.msra.mxu0 0.0
        %1404 = vmatprep.subr.mxu0 0.0
        %1405 = vmatpush1.msra.mxu0 0.0
        %1406 = vmatprep.subr.mxu0 0.0
        %1407 = vmatpush1.msra.mxu0 0.0
        %1408 = vmatprep.subr.mxu0 0.0
        %1409 = vmatpush1.msra.mxu0 0.0
        %1410 = vmatprep.subr.mxu0 0.0
        %1411 = vmatpush1.msra.mxu0 0.0
        %1412 = vmatprep.subr.mxu0 0.0
        %1413 = vmatpush1.msra.mxu0 0.0
        %1414 = vmatprep.subr.mxu0 0.0
        %1415 = vmatpush1.msra.mxu0 0.0
        %1416 = vmatprep.subr.mxu0 0.0
        %1417 = vmatpush1.msra.mxu0 0.0
        %1418 = vmatprep.subr.mxu0 0.0
        %1419 = vmatpush1.msra.mxu0 0.0
        %1420 = vmatprep.subr.mxu0 0.0
        %1421 = vmatpush1.msra.mxu0 0.0
        %1422 = vmatprep.subr.mxu0 0.0
        %1423 = vmatpush1.msra.mxu0 0.0
        %1424 = vmatprep.mubr.f32.mxu0 0.0
        %1425 = vmatmul.mubr.f32.gmra.mrb[0].mxu0 %v1265
        %v1426 = vpop.f32.mrb[0].mxu0
        %v1427 = vadd.f32 0.0, %v1426
        %v1428 = vpop.f32.mrb[0].mxu0
        %1429 = vmatprep.mubr.f32.mxu0 0.0
        %1430 = vmatmul.mubr.f32.gmra.mrb[0].mxu0 %v1268
        %v1431 = vpop.f32.mrb[0].mxu0
        %v1432 = vadd.f32 0.0, %v1431
        %v1433 = vpop.f32.mrb[0].mxu0
        %1434 = vmatprep.mubr.f32.mxu0 0.0
        %1435 = vmatmul.mubr.f32.gmra.mrb[0].mxu0 %v1271
        %v1436 = vpop.f32.mrb[0].mxu0
        %v1437 = vadd.f32 0.0, %v1436
        %v1438 = vpop.f32.mrb[0].mxu0
        %1439 = vmatprep.mubr.f32.mxu0 0.0
        %1440 = vmatmul.mubr.f32.gmra.mrb[0].mxu0 %v1274
        %v1441 = vpop.f32.mrb[0].mxu0
        %v1442 = vadd.f32 0.0, %v1441
        %v1443 = vpop.f32.mrb[0].mxu0
        %1444 = vmatprep.mubr.f32.mxu0 0.0
        %1445 = vmatmul.mubr.f32.gmra.mrb[0].mxu0 %v1277
        %v1446 = vpop.f32.mrb[0].mxu0
        %v1447 = vadd.f32 0.0, %v1446
        %v1448 = vpop.f32.mrb[0].mxu0
        %1449 = vmatprep.mubr.f32.mxu0 0.0
        %1450 = vmatmul.mubr.f32.gmra.mrb[0].mxu0 %v1280
        %v1451 = vpop.f32.mrb[0].mxu0
        %v1452 = vadd.f32 0.0, %v1451
        %v1453 = vpop.f32.mrb[0].mxu0
        %1454 = vmatprep.mubr.f32.mxu0 0.0
        %1455 = vmatmul.mubr.f32.gmra.mrb[0].mxu0 %v1283
        %v1456 = vpop.f32.mrb[0].mxu0
        %v1457 = vadd.f32 0.0, %v1456
        %v1458 = vpop.f32.mrb[0].mxu0
        %1459 = vmatprep.mubr.f32.mxu0 0.0
        %1460 = vmatmul.mubr.f32.gmra.mrb[0].mxu0 %v1286
        %v1461 = vpop.f32.mrb[0].mxu0
        %v1462 = vadd.f32 0.0, %v1461
        %v1463 = vpop.f32.mrb[0].mxu0
        %1464 = vmatprep.mubr.f32.mxu0 0.0
        %1465 = vmatmul.mubr.f32.gmra.mrb[0].mxu0 %v1289
        %v1466 = vpop.f32.mrb[0].mxu0
        %v1467 = vadd.f32 0.0, %v1466
        %v1468 = vpop.f32.mrb[0].mxu0
        %1469 = vmatprep.mubr.f32.mxu0 0.0
        %1470 = vmatmul.mubr.f32.gmra.mrb[0].mxu0 %v1292
        %v1471 = vpop.f32.mrb[0].mxu0
        %v1472 = vadd.f32 0.0, %v1471
        %v1473 = vpop.f32.mrb[0].mxu0
        %1474 = vmatprep.mubr.f32.mxu0 0.0
        %1475 = vmatmul.mubr.f32.gmra.mrb[0].mxu0 %v1295
        %v1476 = vpop.f32.mrb[0].mxu0
        %v1477 = vadd.f32 0.0, %v1476
        %v1478 = vpop.f32.mrb[0].mxu0
        %1479 = vmatprep.mubr.f32.mxu0 0.0
        %1480 = vmatmul.mubr.f32.gmra.mrb[0].mxu0 %v1298
        %v1481 = vpop.f32.mrb[0].mxu0
        %v1482 = vadd.f32 0.0, %v1481
        %v1483 = vpop.f32.mrb[0].mxu0
        %1484 = vmatprep.mubr.f32.mxu0 0.0
        %1485 = vmatmul.mubr.f32.gmra.mrb[0].mxu0 %v1301
        %v1486 = vpop.f32.mrb[0].mxu0
        %v1487 = vadd.f32 0.0, %v1486
        %v1488 = vpop.f32.mrb[0].mxu0
        %1489 = vmatprep.mubr.f32.mxu0 0.0
        %1490 = vmatmul.mubr.f32.gmra.mrb[0].mxu0 %v1304
        %v1491 = vpop.f32.mrb[0].mxu0
        %v1492 = vadd.f32 0.0, %v1491
        %v1493 = vpop.f32.mrb[0].mxu0
        %1494 = vmatprep.mubr.f32.mxu0 0.0
        %1495 = vmatmul.mubr.f32.gmra.mrb[0].mxu0 %v1307
        %v1496 = vpop.f32.mrb[0].mxu0
        %v1497 = vadd.f32 0.0, %v1496
        %v1498 = vpop.f32.mrb[0].mxu0
        %1499 = vmatprep.mubr.f32.mxu0 0.0
        %1500 = vmatmul.mubr.f32.gmra.mrb[0].mxu0 %v1310
        %v1501 = vpop.f32.mrb[0].mxu0
        %v1502 = vadd.f32 0.0, %v1501
        %v1503 = vpop.f32.mrb[0].mxu0
        %1504 = vmatprep.mubr.f32.mxu0 0.0
        %1505 = vmatmul.mubr.f32.gmra.mrb[0].mxu0 %v1313
        %v1506 = vpop.f32.mrb[0].mxu0
        %v1507 = vadd.f32 0.0, %v1506
        %v1508 = vpop.f32.mrb[0].mxu0
        %1509 = vmatprep.mubr.f32.mxu0 0.0
        %1510 = vmatmul.mubr.f32.gmra.mrb[0].mxu0 %v1316
        %v1511 = vpop.f32.mrb[0].mxu0
        %v1512 = vadd.f32 0.0, %v1511
        %v1513 = vpop.f32.mrb[0].mxu0
        %1514 = vmatprep.mubr.f32.mxu0 0.0
        %1515 = vmatmul.mubr.f32.gmra.mrb[0].mxu0 %v1319
        %v1516 = vpop.f32.mrb[0].mxu0
        %v1517 = vadd.f32 0.0, %v1516
        %v1518 = vpop.f32.mrb[0].mxu0
        %1519 = vmatprep.mubr.f32.mxu0 0.0
        %1520 = vmatmul.mubr.f32.gmra.mrb[0].mxu0 %v1322
        %v1521 = vpop.f32.mrb[0].mxu0
        %v1522 = vadd.f32 0.0, %v1521
        %v1523 = vpop.f32.mrb[0].mxu0
        %1524 = vmatprep.mubr.f32.mxu0 0.0
        %1525 = vmatmul.mubr.f32.gmra.mrb[0].mxu0 %v1325
        %v1526 = vpop.f32.mrb[0].mxu0
        %v1527 = vadd.f32 0.0, %v1526
        %v1528 = vpop.f32.mrb[0].mxu0
        %1529 = vmatprep.mubr.f32.mxu0 0.0
        %1530 = vmatmul.mubr.f32.gmra.mrb[0].mxu0 %v1328
        %v1531 = vpop.f32.mrb[0].mxu0
        %v1532 = vadd.f32 0.0, %v1531
        %v1533 = vpop.f32.mrb[0].mxu0
        %1534 = vmatprep.mubr.f32.mxu0 0.0
        %1535 = vmatmul.mubr.f32.gmra.mrb[0].mxu0 %v1331
        %v1536 = vpop.f32.mrb[0].mxu0
        %v1537 = vadd.f32 0.0, %v1536
        %v1538 = vpop.f32.mrb[0].mxu0
        %1539 = vmatprep.mubr.f32.mxu0 0.0
        %1540 = vmatmul.mubr.f32.gmra.mrb[0].mxu0 %v1334
        %v1541 = vpop.f32.mrb[0].mxu0
        %v1542 = vadd.f32 0.0, %v1541
        %v1543 = vpop.f32.mrb[0].mxu0
        %1544 = vmatprep.mubr.f32.mxu0 0.0
        %1545 = vmatmul.mubr.f32.gmra.mrb[0].mxu0 %v1337
        %v1546 = vpop.f32.mrb[0].mxu0
        %v1547 = vadd.f32 0.0, %v1546
        %v1548 = vpop.f32.mrb[0].mxu0
        %1549 = vmatprep.mubr.f32.mxu0 0.0
        %1550 = vmatmul.mubr.f32.gmra.mrb[0].mxu0 %v1340
        %v1551 = vpop.f32.mrb[0].mxu0
        %v1552 = vadd.f32 0.0, %v1551
        %v1553 = vpop.f32.mrb[0].mxu0
        %1554 = vmatprep.mubr.f32.mxu0 0.0
        %1555 = vmatmul.mubr.f32.gmra.mrb[0].mxu0 %v1343
        %v1556 = vpop.f32.mrb[0].mxu0
        %v1557 = vadd.f32 0.0, %v1556
        %v1558 = vpop.f32.mrb[0].mxu0
        %1559 = vmatprep.mubr.f32.mxu0 0.0
        %1560 = vmatmul.mubr.f32.gmra.mrb[0].mxu0 %v1346
        %v1561 = vpop.f32.mrb[0].mxu0
        %v1562 = vadd.f32 0.0, %v1561
        %v1563 = vpop.f32.mrb[0].mxu0
        %1564 = vmatprep.mubr.f32.mxu0 0.0
        %1565 = vmatmul.mubr.f32.gmra.mrb[0].mxu0 %v1349
        %v1566 = vpop.f32.mrb[0].mxu0
        %v1567 = vadd.f32 0.0, %v1566
        %v1568 = vpop.f32.mrb[0].mxu0
        %1569 = vmatprep.mubr.f32.mxu0 0.0
        %1570 = vmatmul.mubr.f32.gmra.mrb[0].mxu0 %v1352
        %v1571 = vpop.f32.mrb[0].mxu0
        %v1572 = vadd.f32 0.0, %v1571
        %v1573 = vpop.f32.mrb[0].mxu0
        %1574 = vmatprep.mubr.f32.mxu0 0.0
        %1575 = vmatmul.mubr.f32.gmra.mrb[0].mxu0 %v1355
        %v1576 = vpop.f32.mrb[0].mxu0
        %v1577 = vadd.f32 0.0, %v1576
        %v1578 = vpop.f32.mrb[0].mxu0
        %1579 = vmatprep.mubr.f32.mxu0 0.0
        %1580 = vmatmul.mubr.f32.gmra.mrb[0].mxu0 %v1358
        %v1581 = vpop.f32.mrb[0].mxu0
        %v1582 = vadd.f32 0.0, %v1581
        %v1583 = vpop.f32.mrb[0].mxu0
        %1584 = vdwg.mxu0
        %v1586 = vsel %vm1137, %v1174, 0
        %v1589 = vsel %vm1137, %v1175, 0
        %v1592 = vsel %vm1137, %v1176, 0
        %v1595 = vsel %vm1137, %v1177, 0
        %v1598 = vsel %vm1137, %v1178, 0
        %v1601 = vsel %vm1137, %v1179, 0
        %v1604 = vsel %vm1137, %v1180, 0
        %v1607 = vsel %vm1137, %v1181, 0
        %v1610 = vsel %vm1137, %v1182, 0
        %v1613 = vsel %vm1137, %v1183, 0
        %v1616 = vsel %vm1137, %v1184, 0
        %v1619 = vsel %vm1137, %v1185, 0
        %v1622 = vsel %vm1137, %v1186, 0
        %v1625 = vsel %vm1137, %v1187, 0
        %v1628 = vsel %vm1137, %v1188, 0
        %v1631 = vsel %vm1137, %v1189, 0
        %v1634 = vsel %vm1137, %v1190, 0
        %v1637 = vsel %vm1137, %v1191, 0
        %v1640 = vsel %vm1137, %v1192, 0
        %v1643 = vsel %vm1137, %v1193, 0
        %v1646 = vsel %vm1137, %v1194, 0
        %v1649 = vsel %vm1137, %v1195, 0
        %v1652 = vsel %vm1137, %v1196, 0
        %v1655 = vsel %vm1137, %v1197, 0
        %v1658 = vsel %vm1137, %v1198, 0
        %v1661 = vsel %vm1137, %v1199, 0
        %v1664 = vsel %vm1137, %v1200, 0
        %v1667 = vsel %vm1137, %v1201, 0
        %v1670 = vsel %vm1137, %v1202, 0
        %v1673 = vsel %vm1137, %v1203, 0
        %v1676 = vsel %vm1137, %v1204, 0
        %v1679 = vsel %vm1137, %v1205, 0
        %1681 = vmatprep.subr.mxu0 0.0
        %1682 = vmatpush1.msra.mxu0 %v1206
        %1683 = vmatprep.subr.mxu0 0.0
        %1684 = vmatpush1.msra.mxu0 %v1207
        %1685 = vmatprep.subr.mxu0 0.0
        %1686 = vmatpush1.msra.mxu0 %v1208
        %1687 = vmatprep.subr.mxu0 0.0
        %1688 = vmatpush1.msra.mxu0 %v1209
        %1689 = vmatprep.subr.mxu0 0.0
        %1690 = vmatpush1.msra.mxu0 %v1210
        %1691 = vmatprep.subr.mxu0 0.0
        %1692 = vmatpush1.msra.mxu0 %v1211
        %1693 = vmatprep.subr.mxu0 0.0
        %1694 = vmatpush1.msra.mxu0 %v1212
        %1695 = vmatprep.subr.mxu0 0.0
        %1696 = vmatpush1.msra.mxu0 %v1213
        %1697 = vmatprep.subr.mxu0 0.0
        %1698 = vmatpush1.msra.mxu0 %v1214
        %1699 = vmatprep.subr.mxu0 0.0
        %1700 = vmatpush1.msra.mxu0 %v1215
        %1701 = vmatprep.subr.mxu0 0.0
        %1702 = vmatpush1.msra.mxu0 %v1216
        %1703 = vmatprep.subr.mxu0 0.0
        %1704 = vmatpush1.msra.mxu0 %v1217
        %1705 = vmatprep.subr.mxu0 0.0
        %1706 = vmatpush1.msra.mxu0 0.0
        %1707 = vmatprep.subr.mxu0 0.0
        %1708 = vmatpush1.msra.mxu0 0.0
        %1709 = vmatprep.subr.mxu0 0.0
        %1710 = vmatpush1.msra.mxu0 0.0
        %1711 = vmatprep.subr.mxu0 0.0
        %1712 = vmatpush1.msra.mxu0 0.0
        %1713 = vmatprep.subr.mxu0 0.0
        %1714 = vmatpush1.msra.mxu0 0.0
        %1715 = vmatprep.subr.mxu0 0.0
        %1716 = vmatpush1.msra.mxu0 0.0
        %1717 = vmatprep.subr.mxu0 0.0
        %1718 = vmatpush1.msra.mxu0 0.0
        %1719 = vmatprep.subr.mxu0 0.0
        %1720 = vmatpush1.msra.mxu0 0.0
        %1721 = vmatprep.subr.mxu0 0.0
        %1722 = vmatpush1.msra.mxu0 0.0
        %1723 = vmatprep.subr.mxu0 0.0
        %1724 = vmatpush1.msra.mxu0 0.0
        %1725 = vmatprep.subr.mxu0 0.0
        %1726 = vmatpush1.msra.mxu0 0.0
        %1727 = vmatprep.subr.mxu0 0.0
        %1728 = vmatpush1.msra.mxu0 0.0
        %1729 = vmatprep.subr.mxu0 0.0
        %1730 = vmatpush1.msra.mxu0 0.0
        %1731 = vmatprep.subr.mxu0 0.0
        %1732 = vmatpush1.msra.mxu0 0.0
        %1733 = vmatprep.subr.mxu0 0.0
        %1734 = vmatpush1.msra.mxu0 0.0
        %1735 = vmatprep.subr.mxu0 0.0
        %1736 = vmatpush1.msra.mxu0 0.0
        %1737 = vmatprep.subr.mxu0 0.0
        %1738 = vmatpush1.msra.mxu0 0.0
        %1739 = vmatprep.subr.mxu0 0.0
        %1740 = vmatpush1.msra.mxu0 0.0
        %1741 = vmatprep.subr.mxu0 0.0
        %1742 = vmatpush1.msra.mxu0 0.0
        %1743 = vmatprep.subr.mxu0 0.0
        %1744 = vmatpush1.msra.mxu0 0.0
        %1745 = vmatprep.mubr.f32.mxu0 0.0
        %1746 = vmatmul.mubr.f32.gmra.mrb[0].mxu0 %v1586
        %v1747 = vpop.f32.mrb[0].mxu0
        %v1748 = vadd.f32 %v1427, %v1747
        %v1749 = vpop.f32.mrb[0].mxu0
        %1750 = vmatprep.mubr.f32.mxu0 0.0
        %1751 = vmatmul.mubr.f32.gmra.mrb[0].mxu0 %v1589
        %v1752 = vpop.f32.mrb[0].mxu0
        %v1753 = vadd.f32 %v1432, %v1752
        %v1754 = vpop.f32.mrb[0].mxu0
        %1755 = vmatprep.mubr.f32.mxu0 0.0
        %1756 = vmatmul.mubr.f32.gmra.mrb[0].mxu0 %v1592
        %v1757 = vpop.f32.mrb[0].mxu0
        %v1758 = vadd.f32 %v1437, %v1757
        %v1759 = vpop.f32.mrb[0].mxu0
        %1760 = vmatprep.mubr.f32.mxu0 0.0
        %1761 = vmatmul.mubr.f32.gmra.mrb[0].mxu0 %v1595
        %v1762 = vpop.f32.mrb[0].mxu0
        %v1763 = vadd.f32 %v1442, %v1762
        %v1764 = vpop.f32.mrb[0].mxu0
        %1765 = vmatprep.mubr.f32.mxu0 0.0
        %1766 = vmatmul.mubr.f32.gmra.mrb[0].mxu0 %v1598
        %v1767 = vpop.f32.mrb[0].mxu0
        %v1768 = vadd.f32 %v1447, %v1767
        %v1769 = vpop.f32.mrb[0].mxu0
        %1770 = vmatprep.mubr.f32.mxu0 0.0
        %1771 = vmatmul.mubr.f32.gmra.mrb[0].mxu0 %v1601
        %v1772 = vpop.f32.mrb[0].mxu0
        %v1773 = vadd.f32 %v1452, %v1772
        %v1774 = vpop.f32.mrb[0].mxu0
        %1775 = vmatprep.mubr.f32.mxu0 0.0
        %1776 = vmatmul.mubr.f32.gmra.mrb[0].mxu0 %v1604
        %v1777 = vpop.f32.mrb[0].mxu0
        %v1778 = vadd.f32 %v1457, %v1777
        %v1779 = vpop.f32.mrb[0].mxu0
        %1780 = vmatprep.mubr.f32.mxu0 0.0
        %1781 = vmatmul.mubr.f32.gmra.mrb[0].mxu0 %v1607
        %v1782 = vpop.f32.mrb[0].mxu0
        %v1783 = vadd.f32 %v1462, %v1782
        %v1784 = vpop.f32.mrb[0].mxu0
        %1785 = vmatprep.mubr.f32.mxu0 0.0
        %1786 = vmatmul.mubr.f32.gmra.mrb[0].mxu0 %v1610
        %v1787 = vpop.f32.mrb[0].mxu0
        %v1788 = vadd.f32 %v1467, %v1787
        %v1789 = vpop.f32.mrb[0].mxu0
        %1790 = vmatprep.mubr.f32.mxu0 0.0
        %1791 = vmatmul.mubr.f32.gmra.mrb[0].mxu0 %v1613
        %v1792 = vpop.f32.mrb[0].mxu0
        %v1793 = vadd.f32 %v1472, %v1792
        %v1794 = vpop.f32.mrb[0].mxu0
        %1795 = vmatprep.mubr.f32.mxu0 0.0
        %1796 = vmatmul.mubr.f32.gmra.mrb[0].mxu0 %v1616
        %v1797 = vpop.f32.mrb[0].mxu0
        %v1798 = vadd.f32 %v1477, %v1797
        %v1799 = vpop.f32.mrb[0].mxu0
        %1800 = vmatprep.mubr.f32.mxu0 0.0
        %1801 = vmatmul.mubr.f32.gmra.mrb[0].mxu0 %v1619
        %v1802 = vpop.f32.mrb[0].mxu0
        %v1803 = vadd.f32 %v1482, %v1802
        %v1804 = vpop.f32.mrb[0].mxu0
        %1805 = vmatprep.mubr.f32.mxu0 0.0
        %1806 = vmatmul.mubr.f32.gmra.mrb[0].mxu0 %v1622
        %v1807 = vpop.f32.mrb[0].mxu0
        %v1808 = vadd.f32 %v1487, %v1807
        %v1809 = vpop.f32.mrb[0].mxu0
        %1810 = vmatprep.mubr.f32.mxu0 0.0
        %1811 = vmatmul.mubr.f32.gmra.mrb[0].mxu0 %v1625
        %v1812 = vpop.f32.mrb[0].mxu0
        %v1813 = vadd.f32 %v1492, %v1812
        %v1814 = vpop.f32.mrb[0].mxu0
        %1815 = vmatprep.mubr.f32.mxu0 0.0
        %1816 = vmatmul.mubr.f32.gmra.mrb[0].mxu0 %v1628
        %v1817 = vpop.f32.mrb[0].mxu0
        %v1818 = vadd.f32 %v1497, %v1817
        %v1819 = vpop.f32.mrb[0].mxu0
        %1820 = vmatprep.mubr.f32.mxu0 0.0
        %1821 = vmatmul.mubr.f32.gmra.mrb[0].mxu0 %v1631
        %v1822 = vpop.f32.mrb[0].mxu0
        %v1823 = vadd.f32 %v1502, %v1822
        %v1824 = vpop.f32.mrb[0].mxu0
        %1825 = vmatprep.mubr.f32.mxu0 0.0
        %1826 = vmatmul.mubr.f32.gmra.mrb[0].mxu0 %v1634
        %v1827 = vpop.f32.mrb[0].mxu0
        %v1828 = vadd.f32 %v1507, %v1827
        %v1829 = vpop.f32.mrb[0].mxu0
        %1830 = vmatprep.mubr.f32.mxu0 0.0
        %1831 = vmatmul.mubr.f32.gmra.mrb[0].mxu0 %v1637
        %v1832 = vpop.f32.mrb[0].mxu0
        %v1833 = vadd.f32 %v1512, %v1832
        %v1834 = vpop.f32.mrb[0].mxu0
        %1835 = vmatprep.mubr.f32.mxu0 0.0
        %1836 = vmatmul.mubr.f32.gmra.mrb[0].mxu0 %v1640
        %v1837 = vpop.f32.mrb[0].mxu0
        %v1838 = vadd.f32 %v1517, %v1837
        %v1839 = vpop.f32.mrb[0].mxu0
        %1840 = vmatprep.mubr.f32.mxu0 0.0
        %1841 = vmatmul.mubr.f32.gmra.mrb[0].mxu0 %v1643
        %v1842 = vpop.f32.mrb[0].mxu0
        %v1843 = vadd.f32 %v1522, %v1842
        %v1844 = vpop.f32.mrb[0].mxu0
        %1845 = vmatprep.mubr.f32.mxu0 0.0
        %1846 = vmatmul.mubr.f32.gmra.mrb[0].mxu0 %v1646
        %v1847 = vpop.f32.mrb[0].mxu0
        %v1848 = vadd.f32 %v1527, %v1847
        %v1849 = vpop.f32.mrb[0].mxu0
        %1850 = vmatprep.mubr.f32.mxu0 0.0
        %1851 = vmatmul.mubr.f32.gmra.mrb[0].mxu0 %v1649
        %v1852 = vpop.f32.mrb[0].mxu0
        %v1853 = vadd.f32 %v1532, %v1852
        %v1854 = vpop.f32.mrb[0].mxu0
        %1855 = vmatprep.mubr.f32.mxu0 0.0
        %1856 = vmatmul.mubr.f32.gmra.mrb[0].mxu0 %v1652
        %v1857 = vpop.f32.mrb[0].mxu0
        %v1858 = vadd.f32 %v1537, %v1857
        %v1859 = vpop.f32.mrb[0].mxu0
        %1860 = vmatprep.mubr.f32.mxu0 0.0
        %1861 = vmatmul.mubr.f32.gmra.mrb[0].mxu0 %v1655
        %v1862 = vpop.f32.mrb[0].mxu0
        %v1863 = vadd.f32 %v1542, %v1862
        %v1864 = vpop.f32.mrb[0].mxu0
        %1865 = vmatprep.mubr.f32.mxu0 0.0
        %1866 = vmatmul.mubr.f32.gmra.mrb[0].mxu0 %v1658
        %v1867 = vpop.f32.mrb[0].mxu0
        %v1868 = vadd.f32 %v1547, %v1867
        %v1869 = vpop.f32.mrb[0].mxu0
        %1870 = vmatprep.mubr.f32.mxu0 0.0
        %1871 = vmatmul.mubr.f32.gmra.mrb[0].mxu0 %v1661
        %v1872 = vpop.f32.mrb[0].mxu0
        %v1873 = vadd.f32 %v1552, %v1872
        %v1874 = vpop.f32.mrb[0].mxu0
        %1875 = vmatprep.mubr.f32.mxu0 0.0
        %1876 = vmatmul.mubr.f32.gmra.mrb[0].mxu0 %v1664
        %v1877 = vpop.f32.mrb[0].mxu0
        %v1878 = vadd.f32 %v1557, %v1877
        %v1879 = vpop.f32.mrb[0].mxu0
        %1880 = vmatprep.mubr.f32.mxu0 0.0
        %1881 = vmatmul.mubr.f32.gmra.mrb[0].mxu0 %v1667
        %v1882 = vpop.f32.mrb[0].mxu0
        %v1883 = vadd.f32 %v1562, %v1882
        %v1884 = vpop.f32.mrb[0].mxu0
        %1885 = vmatprep.mubr.f32.mxu0 0.0
        %1886 = vmatmul.mubr.f32.gmra.mrb[0].mxu0 %v1670
        %v1887 = vpop.f32.mrb[0].mxu0
        %v1888 = vadd.f32 %v1567, %v1887
        %v1889 = vpop.f32.mrb[0].mxu0
        %1890 = vmatprep.mubr.f32.mxu0 0.0
        %1891 = vmatmul.mubr.f32.gmra.mrb[0].mxu0 %v1673
        %v1892 = vpop.f32.mrb[0].mxu0
        %v1893 = vadd.f32 %v1572, %v1892
        %v1894 = vpop.f32.mrb[0].mxu0
        %1895 = vmatprep.mubr.f32.mxu0 0.0
        %1896 = vmatmul.mubr.f32.gmra.mrb[0].mxu0 %v1676
        %v1897 = vpop.f32.mrb[0].mxu0
        %v1898 = vadd.f32 %v1577, %v1897
        %v1899 = vpop.f32.mrb[0].mxu0
        %1900 = vmatprep.mubr.f32.mxu0 0.0
        %1901 = vmatmul.mubr.f32.gmra.mrb[0].mxu0 %v1679
        %v1902 = vpop.f32.mrb[0].mxu0
        %v1903 = vadd.f32 %v1582, %v1902
        %v1904 = vpop.f32.mrb[0].mxu0
        %1905 = vdwg.mxu0
        %s1906 = scalar_lea.vmem [#allocation3], 32
        %v1907 = vld [vmem:[%s1906] sm:$0xff]
        %v1908 = vld [vmem:[%s1906 + $0x8] sm:$0xff]
        %v1909 = vld [vmem:[%s1906 + $0x10] sm:$0xff]
        %v1910 = vld [vmem:[%s1906 + $0x18] sm:$0xff]
        %v1911 = vld [vmem:[%s1906 + $0x20] sm:$0xff]
        %v1912 = vld [vmem:[%s1906 + $0x28] sm:$0xff]
        %v1913 = vld [vmem:[%s1906 + $0x30] sm:$0xff]
        %v1914 = vld [vmem:[%s1906 + $0x38] sm:$0xff]
        %v1915 = vld [vmem:[%s1906 + $0x40] sm:$0xff]
        %v1916 = vld [vmem:[%s1906 + $0x48] sm:$0xff]
        %v1917 = vld [vmem:[%s1906 + $0x50] sm:$0xff]
        %v1918 = vld [vmem:[%s1906 + $0x58] sm:$0xff]
        %v1919 = vld [vmem:[%s1906 + $0x60] sm:$0xff]
        %v1920 = vld [vmem:[%s1906 + $0x68] sm:$0xff]
        %v1921 = vld [vmem:[%s1906 + $0x70] sm:$0xff]
        %v1922 = vld [vmem:[%s1906 + $0x78] sm:$0xff]
        %v1923 = vld [vmem:[%s1906 + $0x80] sm:$0xff]
        %v1924 = vld [vmem:[%s1906 + $0x88] sm:$0xff]
        %v1925 = vld [vmem:[%s1906 + $0x90] sm:$0xff]
        %v1926 = vld [vmem:[%s1906 + $0x98] sm:$0xff]
        %v1927 = vld [vmem:[%s1906 + $0xa0] sm:$0xff]
        %v1928 = vld [vmem:[%s1906 + $0xa8] sm:$0xff]
        %v1929 = vld [vmem:[%s1906 + $0xb0] sm:$0xff]
        %v1930 = vld [vmem:[%s1906 + $0xb8] sm:$0xff]
        %v1931 = vld [vmem:[%s1906 + $0xc0] sm:$0xff]
        %v1932 = vld [vmem:[%s1906 + $0xc8] sm:$0xff]
        %v1933 = vld [vmem:[%s1906 + $0xd0] sm:$0xff]
        %v1934 = vld [vmem:[%s1906 + $0xd8] sm:$0xff]
        %v1935 = vld [vmem:[%s1906 + $0xe0] sm:$0xff]
        %v1936 = vld [vmem:[%s1906 + $0xe8] sm:$0xff]
        %v1937 = vld [vmem:[%s1906 + $0xf0] sm:$0xff]
        %v1938 = vld [vmem:[%s1906 + $0xf8] sm:$0xff]
        %s1939 = scalar_lea.vmem %s2, 192
        %v1940 = vld [vmem:[%s1939] sm:$0xff]
        %v1941 = vld [vmem:[%s1939 + $0x8] sm:$0xff]
        %v1942 = vld [vmem:[%s1939 + $0x10] sm:$0xff]
        %v1943 = vld [vmem:[%s1939 + $0x18] sm:$0xff]
        %v1944 = vld [vmem:[%s1939 + $0x20] sm:$0xff]
        %v1945 = vld [vmem:[%s1939 + $0x28] sm:$0xff]
        %v1946 = vld [vmem:[%s1939 + $0x30] sm:$0xff]
        %v1947 = vld [vmem:[%s1939 + $0x38] sm:$0xff]
        %v1948 = vld [vmem:[%s1939 + $0x40] sm:$0xff]
        %v1949 = vld [vmem:[%s1939 + $0x48] sm:$0xff]
        %v1950 = vld [vmem:[%s1939 + $0x50] sm:$0xff]
        %v1951 = vld [vmem:[%s1939 + $0x58] sm:$0xff]
        %v1953 = vsel %vm1137, %v1907, 0
        %v1956 = vsel %vm1137, %v1908, 0
        %v1959 = vsel %vm1137, %v1909, 0
        %v1962 = vsel %vm1137, %v1910, 0
        %v1965 = vsel %vm1137, %v1911, 0
        %v1968 = vsel %vm1137, %v1912, 0
        %v1971 = vsel %vm1137, %v1913, 0
        %v1974 = vsel %vm1137, %v1914, 0
        %v1977 = vsel %vm1137, %v1915, 0
        %v1980 = vsel %vm1137, %v1916, 0
        %v1983 = vsel %vm1137, %v1917, 0
        %v1986 = vsel %vm1137, %v1918, 0
        %v1989 = vsel %vm1137, %v1919, 0
        %v1992 = vsel %vm1137, %v1920, 0
        %v1995 = vsel %vm1137, %v1921, 0
        %v1998 = vsel %vm1137, %v1922, 0
        %v2001 = vsel %vm1137, %v1923, 0
        %v2004 = vsel %vm1137, %v1924, 0
        %v2007 = vsel %vm1137, %v1925, 0
        %v2010 = vsel %vm1137, %v1926, 0
        %v2013 = vsel %vm1137, %v1927, 0
        %v2016 = vsel %vm1137, %v1928, 0
        %v2019 = vsel %vm1137, %v1929, 0
        %v2022 = vsel %vm1137, %v1930, 0
        %v2025 = vsel %vm1137, %v1931, 0
        %v2028 = vsel %vm1137, %v1932, 0
        %v2031 = vsel %vm1137, %v1933, 0
        %v2034 = vsel %vm1137, %v1934, 0
        %v2037 = vsel %vm1137, %v1935, 0
        %v2040 = vsel %vm1137, %v1936, 0
        %v2043 = vsel %vm1137, %v1937, 0
        %v2046 = vsel %vm1137, %v1938, 0
        %2048 = vmatprep.subr.mxu0 0.0
        %2049 = vmatpush1.msra.mxu0 %v1940
        %2050 = vmatprep.subr.mxu0 0.0
        %2051 = vmatpush1.msra.mxu0 %v1941
        %2052 = vmatprep.subr.mxu0 0.0
        %2053 = vmatpush1.msra.mxu0 %v1942
        %2054 = vmatprep.subr.mxu0 0.0
        %2055 = vmatpush1.msra.mxu0 %v1943
        %2056 = vmatprep.subr.mxu0 0.0
        %2057 = vmatpush1.msra.mxu0 %v1944
        %2058 = vmatprep.subr.mxu0 0.0
        %2059 = vmatpush1.msra.mxu0 %v1945
        %2060 = vmatprep.subr.mxu0 0.0
        %2061 = vmatpush1.msra.mxu0 %v1946
        %2062 = vmatprep.subr.mxu0 0.0
        %2063 = vmatpush1.msra.mxu0 %v1947
        %2064 = vmatprep.subr.mxu0 0.0
        %2065 = vmatpush1.msra.mxu0 %v1948
        %2066 = vmatprep.subr.mxu0 0.0
        %2067 = vmatpush1.msra.mxu0 %v1949
        %2068 = vmatprep.subr.mxu0 0.0
        %2069 = vmatpush1.msra.mxu0 %v1950
        %2070 = vmatprep.subr.mxu0 0.0
        %2071 = vmatpush1.msra.mxu0 %v1951
        %2072 = vmatprep.subr.mxu0 0.0
        %2073 = vmatpush1.msra.mxu0 0.0
        %2074 = vmatprep.subr.mxu0 0.0
        %2075 = vmatpush1.msra.mxu0 0.0
        %2076 = vmatprep.subr.mxu0 0.0
        %2077 = vmatpush1.msra.mxu0 0.0
        %2078 = vmatprep.subr.mxu0 0.0
        %2079 = vmatpush1.msra.mxu0 0.0
        %2080 = vmatprep.subr.mxu0 0.0
        %2081 = vmatpush1.msra.mxu0 0.0
        %2082 = vmatprep.subr.mxu0 0.0
        %2083 = vmatpush1.msra.mxu0 0.0
        %2084 = vmatprep.subr.mxu0 0.0
        %2085 = vmatpush1.msra.mxu0 0.0
        %2086 = vmatprep.subr.mxu0 0.0
        %2087 = vmatpush1.msra.mxu0 0.0
        %2088 = vmatprep.subr.mxu0 0.0
        %2089 = vmatpush1.msra.mxu0 0.0
        %2090 = vmatprep.subr.mxu0 0.0
        %2091 = vmatpush1.msra.mxu0 0.0
        %2092 = vmatprep.subr.mxu0 0.0
        %2093 = vmatpush1.msra.mxu0 0.0
        %2094 = vmatprep.subr.mxu0 0.0
        %2095 = vmatpush1.msra.mxu0 0.0
        %2096 = vmatprep.subr.mxu0 0.0
        %2097 = vmatpush1.msra.mxu0 0.0
        %2098 = vmatprep.subr.mxu0 0.0
        %2099 = vmatpush1.msra.mxu0 0.0
        %2100 = vmatprep.subr.mxu0 0.0
        %2101 = vmatpush1.msra.mxu0 0.0
        %2102 = vmatprep.subr.mxu0 0.0
        %2103 = vmatpush1.msra.mxu0 0.0
        %2104 = vmatprep.subr.mxu0 0.0
        %2105 = vmatpush1.msra.mxu0 0.0
        %2106 = vmatprep.subr.mxu0 0.0
        %2107 = vmatpush1.msra.mxu0 0.0
        %2108 = vmatprep.subr.mxu0 0.0
        %2109 = vmatpush1.msra.mxu0 0.0
        %2110 = vmatprep.subr.mxu0 0.0
        %2111 = vmatpush1.msra.mxu0 0.0
        %2112 = vmatprep.mubr.f32.mxu0 0.0
        %2113 = vmatmul.mubr.f32.gmra.mrb[0].mxu0 %v1953
        %v2114 = vpop.f32.mrb[0].mxu0
        %v2115 = vadd.f32 0.0, %v2114
        %v2116 = vpop.f32.mrb[0].mxu0
        %2117 = vmatprep.mubr.f32.mxu0 0.0
        %2118 = vmatmul.mubr.f32.gmra.mrb[0].mxu0 %v1956
        %v2119 = vpop.f32.mrb[0].mxu0
        %v2120 = vadd.f32 0.0, %v2119
        %v2121 = vpop.f32.mrb[0].mxu0
        %2122 = vmatprep.mubr.f32.mxu0 0.0
        %2123 = vmatmul.mubr.f32.gmra.mrb[0].mxu0 %v1959
        %v2124 = vpop.f32.mrb[0].mxu0
        %v2125 = vadd.f32 0.0, %v2124
        %v2126 = vpop.f32.mrb[0].mxu0
        %2127 = vmatprep.mubr.f32.mxu0 0.0
        %2128 = vmatmul.mubr.f32.gmra.mrb[0].mxu0 %v1962
        %v2129 = vpop.f32.mrb[0].mxu0
        %v2130 = vadd.f32 0.0, %v2129
        %v2131 = vpop.f32.mrb[0].mxu0
        %2132 = vmatprep.mubr.f32.mxu0 0.0
        %2133 = vmatmul.mubr.f32.gmra.mrb[0].mxu0 %v1965
        %v2134 = vpop.f32.mrb[0].mxu0
        %v2135 = vadd.f32 0.0, %v2134
        %v2136 = vpop.f32.mrb[0].mxu0
        %2137 = vmatprep.mubr.f32.mxu0 0.0
        %2138 = vmatmul.mubr.f32.gmra.mrb[0].mxu0 %v1968
        %v2139 = vpop.f32.mrb[0].mxu0
        %v2140 = vadd.f32 0.0, %v2139
        %v2141 = vpop.f32.mrb[0].mxu0
        %2142 = vmatprep.mubr.f32.mxu0 0.0
        %2143 = vmatmul.mubr.f32.gmra.mrb[0].mxu0 %v1971
        %v2144 = vpop.f32.mrb[0].mxu0
        %v2145 = vadd.f32 0.0, %v2144
        %v2146 = vpop.f32.mrb[0].mxu0
        %2147 = vmatprep.mubr.f32.mxu0 0.0
        %2148 = vmatmul.mubr.f32.gmra.mrb[0].mxu0 %v1974
        %v2149 = vpop.f32.mrb[0].mxu0
        %v2150 = vadd.f32 0.0, %v2149
        %v2151 = vpop.f32.mrb[0].mxu0
        %2152 = vmatprep.mubr.f32.mxu0 0.0
        %2153 = vmatmul.mubr.f32.gmra.mrb[0].mxu0 %v1977
        %v2154 = vpop.f32.mrb[0].mxu0
        %v2155 = vadd.f32 0.0, %v2154
        %v2156 = vpop.f32.mrb[0].mxu0
        %2157 = vmatprep.mubr.f32.mxu0 0.0
        %2158 = vmatmul.mubr.f32.gmra.mrb[0].mxu0 %v1980
        %v2159 = vpop.f32.mrb[0].mxu0
        %v2160 = vadd.f32 0.0, %v2159
        %v2161 = vpop.f32.mrb[0].mxu0
        %2162 = vmatprep.mubr.f32.mxu0 0.0
        %2163 = vmatmul.mubr.f32.gmra.mrb[0].mxu0 %v1983
        %v2164 = vpop.f32.mrb[0].mxu0
        %v2165 = vadd.f32 0.0, %v2164
        %v2166 = vpop.f32.mrb[0].mxu0
        %2167 = vmatprep.mubr.f32.mxu0 0.0
        %2168 = vmatmul.mubr.f32.gmra.mrb[0].mxu0 %v1986
        %v2169 = vpop.f32.mrb[0].mxu0
        %v2170 = vadd.f32 0.0, %v2169
        %v2171 = vpop.f32.mrb[0].mxu0
        %2172 = vmatprep.mubr.f32.mxu0 0.0
        %2173 = vmatmul.mubr.f32.gmra.mrb[0].mxu0 %v1989
        %v2174 = vpop.f32.mrb[0].mxu0
        %v2175 = vadd.f32 0.0, %v2174
        %v2176 = vpop.f32.mrb[0].mxu0
        %2177 = vmatprep.mubr.f32.mxu0 0.0
        %2178 = vmatmul.mubr.f32.gmra.mrb[0].mxu0 %v1992
        %v2179 = vpop.f32.mrb[0].mxu0
        %v2180 = vadd.f32 0.0, %v2179
        %v2181 = vpop.f32.mrb[0].mxu0
        %2182 = vmatprep.mubr.f32.mxu0 0.0
        %2183 = vmatmul.mubr.f32.gmra.mrb[0].mxu0 %v1995
        %v2184 = vpop.f32.mrb[0].mxu0
        %v2185 = vadd.f32 0.0, %v2184
        %v2186 = vpop.f32.mrb[0].mxu0
        %2187 = vmatprep.mubr.f32.mxu0 0.0
        %2188 = vmatmul.mubr.f32.gmra.mrb[0].mxu0 %v1998
        %v2189 = vpop.f32.mrb[0].mxu0
        %v2190 = vadd.f32 0.0, %v2189
        %v2191 = vpop.f32.mrb[0].mxu0
        %2192 = vmatprep.mubr.f32.mxu0 0.0
        %2193 = vmatmul.mubr.f32.gmra.mrb[0].mxu0 %v2001
        %v2194 = vpop.f32.mrb[0].mxu0
        %v2195 = vadd.f32 0.0, %v2194
        %v2196 = vpop.f32.mrb[0].mxu0
        %2197 = vmatprep.mubr.f32.mxu0 0.0
        %2198 = vmatmul.mubr.f32.gmra.mrb[0].mxu0 %v2004
        %v2199 = vpop.f32.mrb[0].mxu0
        %v2200 = vadd.f32 0.0, %v2199
        %v2201 = vpop.f32.mrb[0].mxu0
        %2202 = vmatprep.mubr.f32.mxu0 0.0
        %2203 = vmatmul.mubr.f32.gmra.mrb[0].mxu0 %v2007
        %v2204 = vpop.f32.mrb[0].mxu0
        %v2205 = vadd.f32 0.0, %v2204
        %v2206 = vpop.f32.mrb[0].mxu0
        %2207 = vmatprep.mubr.f32.mxu0 0.0
        %2208 = vmatmul.mubr.f32.gmra.mrb[0].mxu0 %v2010
        %v2209 = vpop.f32.mrb[0].mxu0
        %v2210 = vadd.f32 0.0, %v2209
        %v2211 = vpop.f32.mrb[0].mxu0
        %2212 = vmatprep.mubr.f32.mxu0 0.0
        %2213 = vmatmul.mubr.f32.gmra.mrb[0].mxu0 %v2013
        %v2214 = vpop.f32.mrb[0].mxu0
        %v2215 = vadd.f32 0.0, %v2214
        %v2216 = vpop.f32.mrb[0].mxu0
        %2217 = vmatprep.mubr.f32.mxu0 0.0
        %2218 = vmatmul.mubr.f32.gmra.mrb[0].mxu0 %v2016
        %v2219 = vpop.f32.mrb[0].mxu0
        %v2220 = vadd.f32 0.0, %v2219
        %v2221 = vpop.f32.mrb[0].mxu0
        %2222 = vmatprep.mubr.f32.mxu0 0.0
        %2223 = vmatmul.mubr.f32.gmra.mrb[0].mxu0 %v2019
        %v2224 = vpop.f32.mrb[0].mxu0
        %v2225 = vadd.f32 0.0, %v2224
        %v2226 = vpop.f32.mrb[0].mxu0
        %2227 = vmatprep.mubr.f32.mxu0 0.0
        %2228 = vmatmul.mubr.f32.gmra.mrb[0].mxu0 %v2022
        %v2229 = vpop.f32.mrb[0].mxu0
        %v2230 = vadd.f32 0.0, %v2229
        %v2231 = vpop.f32.mrb[0].mxu0
        %2232 = vmatprep.mubr.f32.mxu0 0.0
        %2233 = vmatmul.mubr.f32.gmra.mrb[0].mxu0 %v2025
        %v2234 = vpop.f32.mrb[0].mxu0
        %v2235 = vadd.f32 0.0, %v2234
        %v2236 = vpop.f32.mrb[0].mxu0
        %2237 = vmatprep.mubr.f32.mxu0 0.0
        %2238 = vmatmul.mubr.f32.gmra.mrb[0].mxu0 %v2028
        %v2239 = vpop.f32.mrb[0].mxu0
        %v2240 = vadd.f32 0.0, %v2239
        %v2241 = vpop.f32.mrb[0].mxu0
        %2242 = vmatprep.mubr.f32.mxu0 0.0
        %2243 = vmatmul.mubr.f32.gmra.mrb[0].mxu0 %v2031
        %v2244 = vpop.f32.mrb[0].mxu0
        %v2245 = vadd.f32 0.0, %v2244
        %v2246 = vpop.f32.mrb[0].mxu0
        %2247 = vmatprep.mubr.f32.mxu0 0.0
        %2248 = vmatmul.mubr.f32.gmra.mrb[0].mxu0 %v2034
        %v2249 = vpop.f32.mrb[0].mxu0
        %v2250 = vadd.f32 0.0, %v2249
        %v2251 = vpop.f32.mrb[0].mxu0
        %2252 = vmatprep.mubr.f32.mxu0 0.0
        %2253 = vmatmul.mubr.f32.gmra.mrb[0].mxu0 %v2037
        %v2254 = vpop.f32.mrb[0].mxu0
        %v2255 = vadd.f32 0.0, %v2254
        %v2256 = vpop.f32.mrb[0].mxu0
        %2257 = vmatprep.mubr.f32.mxu0 0.0
        %2258 = vmatmul.mubr.f32.gmra.mrb[0].mxu0 %v2040
        %v2259 = vpop.f32.mrb[0].mxu0
        %v2260 = vadd.f32 0.0, %v2259
        %v2261 = vpop.f32.mrb[0].mxu0
        %2262 = vmatprep.mubr.f32.mxu0 0.0
        %2263 = vmatmul.mubr.f32.gmra.mrb[0].mxu0 %v2043
        %v2264 = vpop.f32.mrb[0].mxu0
        %v2265 = vadd.f32 0.0, %v2264
        %v2266 = vpop.f32.mrb[0].mxu0
        %2267 = vmatprep.mubr.f32.mxu0 0.0
        %2268 = vmatmul.mubr.f32.gmra.mrb[0].mxu0 %v2046
        %v2269 = vpop.f32.mrb[0].mxu0
        %v2270 = vadd.f32 0.0, %v2269
        %v2271 = vpop.f32.mrb[0].mxu0
        %2272 = vdwg.mxu0
        %v2273 = vadd.f32 %v1748, %v2115
        %v2274 = vadd.f32 %v1753, %v2120
        %v2275 = vadd.f32 %v1758, %v2125
        %v2276 = vadd.f32 %v1763, %v2130
        %v2277 = vadd.f32 %v1768, %v2135
        %v2278 = vadd.f32 %v1773, %v2140
        %v2279 = vadd.f32 %v1778, %v2145
        %v2280 = vadd.f32 %v1783, %v2150
        %v2281 = vadd.f32 %v1788, %v2155
        %v2282 = vadd.f32 %v1793, %v2160
        %v2283 = vadd.f32 %v1798, %v2165
        %v2284 = vadd.f32 %v1803, %v2170
        %v2285 = vadd.f32 %v1808, %v2175
        %v2286 = vadd.f32 %v1813, %v2180
        %v2287 = vadd.f32 %v1818, %v2185
        %v2288 = vadd.f32 %v1823, %v2190
        %v2289 = vadd.f32 %v1828, %v2195
        %v2290 = vadd.f32 %v1833, %v2200
        %v2291 = vadd.f32 %v1838, %v2205
        %v2292 = vadd.f32 %v1843, %v2210
        %v2293 = vadd.f32 %v1848, %v2215
        %v2294 = vadd.f32 %v1853, %v2220
        %v2295 = vadd.f32 %v1858, %v2225
        %v2296 = vadd.f32 %v1863, %v2230
        %v2297 = vadd.f32 %v1868, %v2235
        %v2298 = vadd.f32 %v1873, %v2240
        %v2299 = vadd.f32 %v1878, %v2245
        %v2300 = vadd.f32 %v1883, %v2250
        %v2301 = vadd.f32 %v1888, %v2255
        %v2302 = vadd.f32 %v1893, %v2260
        %v2303 = vadd.f32 %v1898, %v2265
        %v2304 = vadd.f32 %v1903, %v2270
        %v2305 = vld [vmem:[%s5] sm:$0x1]
        %v2307 = vlaneseq
        %v2308 = vshrl.u32 %v2307, 7
        %v2309 = vsub.s32 0, %v2308
        %v2310 = vrot.slane %v2305, %v2309
        %v2312 = vadd.f32 %v2273, %v2310
        %v2313 = vadd.f32 %v2274, %v2310
        %v2314 = vadd.f32 %v2275, %v2310
        %v2315 = vadd.f32 %v2276, %v2310
        %v2316 = vadd.f32 %v2277, %v2310
        %v2317 = vadd.f32 %v2278, %v2310
        %v2318 = vadd.f32 %v2279, %v2310
        %v2319 = vadd.f32 %v2280, %v2310
        %v2320 = vadd.f32 %v2281, %v2310
        %v2321 = vadd.f32 %v2282, %v2310
        %v2322 = vadd.f32 %v2283, %v2310
        %v2323 = vadd.f32 %v2284, %v2310
        %v2324 = vadd.f32 %v2285, %v2310
        %v2325 = vadd.f32 %v2286, %v2310
        %v2326 = vadd.f32 %v2287, %v2310
        %v2327 = vadd.f32 %v2288, %v2310
        %v2328 = vadd.f32 %v2289, %v2310
        %v2329 = vadd.f32 %v2290, %v2310
        %v2330 = vadd.f32 %v2291, %v2310
        %v2331 = vadd.f32 %v2292, %v2310
        %v2332 = vadd.f32 %v2293, %v2310
        %v2333 = vadd.f32 %v2294, %v2310
        %v2334 = vadd.f32 %v2295, %v2310
        %v2335 = vadd.f32 %v2296, %v2310
        %v2336 = vadd.f32 %v2297, %v2310
        %v2337 = vadd.f32 %v2298, %v2310
        %v2338 = vadd.f32 %v2299, %v2310
        %v2339 = vadd.f32 %v2300, %v2310
        %v2340 = vadd.f32 %v2301, %v2310
        %v2341 = vadd.f32 %v2302, %v2310
        %v2342 = vadd.f32 %v2303, %v2310
        %v2343 = vadd.f32 %v2304, %v2310
        %v2344 = vmax.f32 %v2312, 0.0
        %v2345 = vmax.f32 %v2313, 0.0
        %v2346 = vmax.f32 %v2314, 0.0
        %v2347 = vmax.f32 %v2315, 0.0
        %v2348 = vmax.f32 %v2316, 0.0
        %v2349 = vmax.f32 %v2317, 0.0
        %v2350 = vmax.f32 %v2318, 0.0
        %v2351 = vmax.f32 %v2319, 0.0
        %v2352 = vmax.f32 %v2320, 0.0
        %v2353 = vmax.f32 %v2321, 0.0
        %v2354 = vmax.f32 %v2322, 0.0
        %v2355 = vmax.f32 %v2323, 0.0
        %v2356 = vmax.f32 %v2324, 0.0
        %v2357 = vmax.f32 %v2325, 0.0
        %v2358 = vmax.f32 %v2326, 0.0
        %v2359 = vmax.f32 %v2327, 0.0
        %v2360 = vmax.f32 %v2328, 0.0
        %v2361 = vmax.f32 %v2329, 0.0
        %v2362 = vmax.f32 %v2330, 0.0
        %v2363 = vmax.f32 %v2331, 0.0
        %v2364 = vmax.f32 %v2332, 0.0
        %v2365 = vmax.f32 %v2333, 0.0
        %v2366 = vmax.f32 %v2334, 0.0
        %v2367 = vmax.f32 %v2335, 0.0
        %v2368 = vmax.f32 %v2336, 0.0
        %v2369 = vmax.f32 %v2337, 0.0
        %v2370 = vmax.f32 %v2338, 0.0
        %v2371 = vmax.f32 %v2339, 0.0
        %v2372 = vmax.f32 %v2340, 0.0
        %v2373 = vmax.f32 %v2341, 0.0
        %v2374 = vmax.f32 %v2342, 0.0
        %v2375 = vmax.f32 %v2343, 0.0
        %v2376 = vld [vmem:[%s3] sm:$0xff]
        %v2377 = vld [vmem:[%s3 + $0x8] sm:$0xff]
        %v2378 = vld [vmem:[%s3 + $0x10] sm:$0xff]
        %v2379 = vld [vmem:[%s3 + $0x18] sm:$0xff]
        %v2380 = vld [vmem:[%s6] sm:$0x1]
        %v2382 = vlaneseq
        %v2383 = vshrl.u32 %v2382, 7
        %v2384 = vsub.s32 0, %v2383
        %v2385 = vrot.slane %v2380, %v2384
        %v2388 = vsel %vm589, %v2344, 0
        %v2391 = vsel %vm589, %v2345, 0
        %v2394 = vsel %vm589, %v2346, 0
        %v2397 = vsel %vm589, %v2347, 0
        %v2400 = vsel %vm589, %v2348, 0
        %v2403 = vsel %vm589, %v2349, 0
        %v2406 = vsel %vm589, %v2350, 0
        %v2409 = vsel %vm589, %v2351, 0
        %v2412 = vsel %vm589, %v2352, 0
        %v2415 = vsel %vm589, %v2353, 0
        %v2418 = vsel %vm589, %v2354, 0
        %v2421 = vsel %vm589, %v2355, 0
        %v2424 = vsel %vm589, %v2356, 0
        %v2427 = vsel %vm589, %v2357, 0
        %v2430 = vsel %vm589, %v2358, 0
        %v2433 = vsel %vm589, %v2359, 0
        %v2436 = vsel %vm589, %v2360, 0
        %v2439 = vsel %vm589, %v2361, 0
        %v2442 = vsel %vm589, %v2362, 0
        %v2445 = vsel %vm589, %v2363, 0
        %v2448 = vsel %vm589, %v2364, 0
        %v2451 = vsel %vm589, %v2365, 0
        %v2454 = vsel %vm589, %v2366, 0
        %v2457 = vsel %vm589, %v2367, 0
        %v2460 = vsel %vm589, %v2368, 0
        %v2463 = vsel %vm589, %v2369, 0
        %v2466 = vsel %vm589, %v2370, 0
        %v2469 = vsel %vm589, %v2371, 0
        %v2472 = vsel %vm589, %v2372, 0
        %v2475 = vsel %vm589, %v2373, 0
        %v2478 = vsel %vm589, %v2374, 0
        %v2481 = vsel %vm589, %v2375, 0
        %2483 = vmatprep.subr.mxu0 0.0
        %2484 = vmatpush1.msra.mxu0 %v2376
        %2485 = vmatprep.subr.mxu0 0.0
        %2486 = vmatpush1.msra.mxu0 %v2377
        %2487 = vmatprep.subr.mxu0 0.0
        %2488 = vmatpush1.msra.mxu0 %v2378
        %2489 = vmatprep.subr.mxu0 0.0
        %2490 = vmatpush1.msra.mxu0 %v2379
        %2491 = vmatprep.subr.mxu0 0.0
        %2492 = vmatpush1.msra.mxu0 0.0
        %2493 = vmatprep.subr.mxu0 0.0
        %2494 = vmatpush1.msra.mxu0 0.0
        %2495 = vmatprep.subr.mxu0 0.0
        %2496 = vmatpush1.msra.mxu0 0.0
        %2497 = vmatprep.subr.mxu0 0.0
        %2498 = vmatpush1.msra.mxu0 0.0
        %2499 = vmatprep.subr.mxu0 0.0
        %2500 = vmatpush1.msra.mxu0 0.0
        %2501 = vmatprep.subr.mxu0 0.0
        %2502 = vmatpush1.msra.mxu0 0.0
        %2503 = vmatprep.subr.mxu0 0.0
        %2504 = vmatpush1.msra.mxu0 0.0
        %2505 = vmatprep.subr.mxu0 0.0
        %2506 = vmatpush1.msra.mxu0 0.0
        %2507 = vmatprep.subr.mxu0 0.0
        %2508 = vmatpush1.msra.mxu0 0.0
        %2509 = vmatprep.subr.mxu0 0.0
        %2510 = vmatpush1.msra.mxu0 0.0
        %2511 = vmatprep.subr.mxu0 0.0
        %2512 = vmatpush1.msra.mxu0 0.0
        %2513 = vmatprep.subr.mxu0 0.0
        %2514 = vmatpush1.msra.mxu0 0.0
        %2515 = vmatprep.subr.mxu0 0.0
        %2516 = vmatpush1.msra.mxu0 0.0
        %2517 = vmatprep.subr.mxu0 0.0
        %2518 = vmatpush1.msra.mxu0 0.0
        %2519 = vmatprep.subr.mxu0 0.0
        %2520 = vmatpush1.msra.mxu0 0.0
        %2521 = vmatprep.subr.mxu0 0.0
        %2522 = vmatpush1.msra.mxu0 0.0
        %2523 = vmatprep.subr.mxu0 0.0
        %2524 = vmatpush1.msra.mxu0 0.0
        %2525 = vmatprep.subr.mxu0 0.0
        %2526 = vmatpush1.msra.mxu0 0.0
        %2527 = vmatprep.subr.mxu0 0.0
        %2528 = vmatpush1.msra.mxu0 0.0
        %2529 = vmatprep.subr.mxu0 0.0
        %2530 = vmatpush1.msra.mxu0 0.0
        %2531 = vmatprep.subr.mxu0 0.0
        %2532 = vmatpush1.msra.mxu0 0.0
        %2533 = vmatprep.subr.mxu0 0.0
        %2534 = vmatpush1.msra.mxu0 0.0
        %2535 = vmatprep.subr.mxu0 0.0
        %2536 = vmatpush1.msra.mxu0 0.0
        %2537 = vmatprep.subr.mxu0 0.0
        %2538 = vmatpush1.msra.mxu0 0.0
        %2539 = vmatprep.subr.mxu0 0.0
        %2540 = vmatpush1.msra.mxu0 0.0
        %2541 = vmatprep.subr.mxu0 0.0
        %2542 = vmatpush1.msra.mxu0 0.0
        %2543 = vmatprep.subr.mxu0 0.0
        %2544 = vmatpush1.msra.mxu0 0.0
        %2545 = vmatprep.subr.mxu0 0.0
        %2546 = vmatpush1.msra.mxu0 0.0
        %2547 = vmatprep.mubr.f32.mxu0 0.0
        %2548 = vmatmul.mubr.f32.gmra.mrb[0].mxu0 %v2388
        %v2549 = vpop.f32.mrb[0].mxu0
        %v2550 = vadd.f32 %v2385, %v2549
        %v2551 = vpop.f32.mrb[0].mxu0
        %2552 = vmatprep.mubr.f32.mxu0 0.0
        %2553 = vmatmul.mubr.f32.gmra.mrb[0].mxu0 %v2391
        %v2554 = vpop.f32.mrb[0].mxu0
        %v2555 = vadd.f32 %v2385, %v2554
        %v2556 = vpop.f32.mrb[0].mxu0
        %2557 = vmatprep.mubr.f32.mxu0 0.0
        %2558 = vmatmul.mubr.f32.gmra.mrb[0].mxu0 %v2394
        %v2559 = vpop.f32.mrb[0].mxu0
        %v2560 = vadd.f32 %v2385, %v2559
        %v2561 = vpop.f32.mrb[0].mxu0
        %2562 = vmatprep.mubr.f32.mxu0 0.0
        %2563 = vmatmul.mubr.f32.gmra.mrb[0].mxu0 %v2397
        %v2564 = vpop.f32.mrb[0].mxu0
        %v2565 = vadd.f32 %v2385, %v2564
        %v2566 = vpop.f32.mrb[0].mxu0
        %2567 = vmatprep.mubr.f32.mxu0 0.0
        %2568 = vmatmul.mubr.f32.gmra.mrb[0].mxu0 %v2400
        %v2569 = vpop.f32.mrb[0].mxu0
        %v2570 = vadd.f32 %v2385, %v2569
        %v2571 = vpop.f32.mrb[0].mxu0
        %2572 = vmatprep.mubr.f32.mxu0 0.0
        %2573 = vmatmul.mubr.f32.gmra.mrb[0].mxu0 %v2403
        %v2574 = vpop.f32.mrb[0].mxu0
        %v2575 = vadd.f32 %v2385, %v2574
        %v2576 = vpop.f32.mrb[0].mxu0
        %2577 = vmatprep.mubr.f32.mxu0 0.0
        %2578 = vmatmul.mubr.f32.gmra.mrb[0].mxu0 %v2406
        %v2579 = vpop.f32.mrb[0].mxu0
        %v2580 = vadd.f32 %v2385, %v2579
        %v2581 = vpop.f32.mrb[0].mxu0
        %2582 = vmatprep.mubr.f32.mxu0 0.0
        %2583 = vmatmul.mubr.f32.gmra.mrb[0].mxu0 %v2409
        %v2584 = vpop.f32.mrb[0].mxu0
        %v2585 = vadd.f32 %v2385, %v2584
        %v2586 = vpop.f32.mrb[0].mxu0
        %2587 = vmatprep.mubr.f32.mxu0 0.0
        %2588 = vmatmul.mubr.f32.gmra.mrb[0].mxu0 %v2412
        %v2589 = vpop.f32.mrb[0].mxu0
        %v2590 = vadd.f32 %v2385, %v2589
        %v2591 = vpop.f32.mrb[0].mxu0
        %2592 = vmatprep.mubr.f32.mxu0 0.0
        %2593 = vmatmul.mubr.f32.gmra.mrb[0].mxu0 %v2415
        %v2594 = vpop.f32.mrb[0].mxu0
        %v2595 = vadd.f32 %v2385, %v2594
        %v2596 = vpop.f32.mrb[0].mxu0
        %2597 = vmatprep.mubr.f32.mxu0 0.0
        %2598 = vmatmul.mubr.f32.gmra.mrb[0].mxu0 %v2418
        %v2599 = vpop.f32.mrb[0].mxu0
        %v2600 = vadd.f32 %v2385, %v2599
        %v2601 = vpop.f32.mrb[0].mxu0
        %2602 = vmatprep.mubr.f32.mxu0 0.0
        %2603 = vmatmul.mubr.f32.gmra.mrb[0].mxu0 %v2421
        %v2604 = vpop.f32.mrb[0].mxu0
        %v2605 = vadd.f32 %v2385, %v2604
        %v2606 = vpop.f32.mrb[0].mxu0
        %2607 = vmatprep.mubr.f32.mxu0 0.0
        %2608 = vmatmul.mubr.f32.gmra.mrb[0].mxu0 %v2424
        %v2609 = vpop.f32.mrb[0].mxu0
        %v2610 = vadd.f32 %v2385, %v2609
        %v2611 = vpop.f32.mrb[0].mxu0
        %2612 = vmatprep.mubr.f32.mxu0 0.0
        %2613 = vmatmul.mubr.f32.gmra.mrb[0].mxu0 %v2427
        %v2614 = vpop.f32.mrb[0].mxu0
        %v2615 = vadd.f32 %v2385, %v2614
        %v2616 = vpop.f32.mrb[0].mxu0
        %2617 = vmatprep.mubr.f32.mxu0 0.0
        %2618 = vmatmul.mubr.f32.gmra.mrb[0].mxu0 %v2430
        %v2619 = vpop.f32.mrb[0].mxu0
        %v2620 = vadd.f32 %v2385, %v2619
        %v2621 = vpop.f32.mrb[0].mxu0
        %2622 = vmatprep.mubr.f32.mxu0 0.0
        %2623 = vmatmul.mubr.f32.gmra.mrb[0].mxu0 %v2433
        %v2624 = vpop.f32.mrb[0].mxu0
        %v2625 = vadd.f32 %v2385, %v2624
        %v2626 = vpop.f32.mrb[0].mxu0
        %2627 = vmatprep.mubr.f32.mxu0 0.0
        %2628 = vmatmul.mubr.f32.gmra.mrb[0].mxu0 %v2436
        %v2629 = vpop.f32.mrb[0].mxu0
        %v2630 = vadd.f32 %v2385, %v2629
        %v2631 = vpop.f32.mrb[0].mxu0
        %2632 = vmatprep.mubr.f32.mxu0 0.0
        %2633 = vmatmul.mubr.f32.gmra.mrb[0].mxu0 %v2439
        %v2634 = vpop.f32.mrb[0].mxu0
        %v2635 = vadd.f32 %v2385, %v2634
        %v2636 = vpop.f32.mrb[0].mxu0
        %2637 = vmatprep.mubr.f32.mxu0 0.0
        %2638 = vmatmul.mubr.f32.gmra.mrb[0].mxu0 %v2442
        %v2639 = vpop.f32.mrb[0].mxu0
        %v2640 = vadd.f32 %v2385, %v2639
        %v2641 = vpop.f32.mrb[0].mxu0
        %2642 = vmatprep.mubr.f32.mxu0 0.0
        %2643 = vmatmul.mubr.f32.gmra.mrb[0].mxu0 %v2445
        %v2644 = vpop.f32.mrb[0].mxu0
        %v2645 = vadd.f32 %v2385, %v2644
        %v2646 = vpop.f32.mrb[0].mxu0
        %2647 = vmatprep.mubr.f32.mxu0 0.0
        %2648 = vmatmul.mubr.f32.gmra.mrb[0].mxu0 %v2448
        %v2649 = vpop.f32.mrb[0].mxu0
        %v2650 = vadd.f32 %v2385, %v2649
        %v2651 = vpop.f32.mrb[0].mxu0
        %2652 = vmatprep.mubr.f32.mxu0 0.0
        %2653 = vmatmul.mubr.f32.gmra.mrb[0].mxu0 %v2451
        %v2654 = vpop.f32.mrb[0].mxu0
        %v2655 = vadd.f32 %v2385, %v2654
        %v2656 = vpop.f32.mrb[0].mxu0
        %2657 = vmatprep.mubr.f32.mxu0 0.0
        %2658 = vmatmul.mubr.f32.gmra.mrb[0].mxu0 %v2454
        %v2659 = vpop.f32.mrb[0].mxu0
        %v2660 = vadd.f32 %v2385, %v2659
        %v2661 = vpop.f32.mrb[0].mxu0
        %2662 = vmatprep.mubr.f32.mxu0 0.0
        %2663 = vmatmul.mubr.f32.gmra.mrb[0].mxu0 %v2457
        %v2664 = vpop.f32.mrb[0].mxu0
        %v2665 = vadd.f32 %v2385, %v2664
        %v2666 = vpop.f32.mrb[0].mxu0
        %2667 = vmatprep.mubr.f32.mxu0 0.0
        %2668 = vmatmul.mubr.f32.gmra.mrb[0].mxu0 %v2460
        %v2669 = vpop.f32.mrb[0].mxu0
        %v2670 = vadd.f32 %v2385, %v2669
        %v2671 = vpop.f32.mrb[0].mxu0
        %2672 = vmatprep.mubr.f32.mxu0 0.0
        %2673 = vmatmul.mubr.f32.gmra.mrb[0].mxu0 %v2463
        %v2674 = vpop.f32.mrb[0].mxu0
        %v2675 = vadd.f32 %v2385, %v2674
        %v2676 = vpop.f32.mrb[0].mxu0
        %2677 = vmatprep.mubr.f32.mxu0 0.0
        %2678 = vmatmul.mubr.f32.gmra.mrb[0].mxu0 %v2466
        %v2679 = vpop.f32.mrb[0].mxu0
        %v2680 = vadd.f32 %v2385, %v2679
        %v2681 = vpop.f32.mrb[0].mxu0
        %2682 = vmatprep.mubr.f32.mxu0 0.0
        %2683 = vmatmul.mubr.f32.gmra.mrb[0].mxu0 %v2469
        %v2684 = vpop.f32.mrb[0].mxu0
        %v2685 = vadd.f32 %v2385, %v2684
        %v2686 = vpop.f32.mrb[0].mxu0
        %2687 = vmatprep.mubr.f32.mxu0 0.0
        %2688 = vmatmul.mubr.f32.gmra.mrb[0].mxu0 %v2472
        %v2689 = vpop.f32.mrb[0].mxu0
        %v2690 = vadd.f32 %v2385, %v2689
        %v2691 = vpop.f32.mrb[0].mxu0
        %2692 = vmatprep.mubr.f32.mxu0 0.0
        %2693 = vmatmul.mubr.f32.gmra.mrb[0].mxu0 %v2475
        %v2694 = vpop.f32.mrb[0].mxu0
        %v2695 = vadd.f32 %v2385, %v2694
        %v2696 = vpop.f32.mrb[0].mxu0
        %2697 = vmatprep.mubr.f32.mxu0 0.0
        %2698 = vmatmul.mubr.f32.gmra.mrb[0].mxu0 %v2478
        %v2699 = vpop.f32.mrb[0].mxu0
        %v2700 = vadd.f32 %v2385, %v2699
        %v2701 = vpop.f32.mrb[0].mxu0
        %2702 = vmatprep.mubr.f32.mxu0 0.0
        %2703 = vmatmul.mubr.f32.gmra.mrb[0].mxu0 %v2481
        %v2704 = vpop.f32.mrb[0].mxu0
        %v2705 = vadd.f32 %v2385, %v2704
        %v2706 = vpop.f32.mrb[0].mxu0
        %2707 = vdwg.mxu0
        %v2708 = vadd.f32 %v2550, %v277
        %v2709 = vadd.f32 %v2555, %v278
        %v2710 = vadd.f32 %v2560, %v279
        %v2711 = vadd.f32 %v2565, %v280
        %v2712 = vadd.f32 %v2570, %v281
        %v2713 = vadd.f32 %v2575, %v282
        %v2714 = vadd.f32 %v2580, %v283
        %v2715 = vadd.f32 %v2585, %v284
        %v2716 = vadd.f32 %v2590, %v285
        %v2717 = vadd.f32 %v2595, %v286
        %v2718 = vadd.f32 %v2600, %v287
        %v2719 = vadd.f32 %v2605, %v288
        %v2720 = vadd.f32 %v2610, %v289
        %v2721 = vadd.f32 %v2615, %v290
        %v2722 = vadd.f32 %v2620, %v291
        %v2723 = vadd.f32 %v2625, %v292
        %v2724 = vadd.f32 %v2630, %v293
        %v2725 = vadd.f32 %v2635, %v294
        %v2726 = vadd.f32 %v2640, %v295
        %v2727 = vadd.f32 %v2645, %v296
        %v2728 = vadd.f32 %v2650, %v297
        %v2729 = vadd.f32 %v2655, %v298
        %v2730 = vadd.f32 %v2660, %v299
        %v2731 = vadd.f32 %v2665, %v300
        %v2732 = vadd.f32 %v2670, %v301
        %v2733 = vadd.f32 %v2675, %v302
        %v2734 = vadd.f32 %v2680, %v303
        %v2735 = vadd.f32 %v2685, %v304
        %v2736 = vadd.f32 %v2690, %v305
        %v2737 = vadd.f32 %v2695, %v306
        %v2738 = vadd.f32 %v2700, %v307
        %v2739 = vadd.f32 %v2705, %v308
        %v2740 = vmax.f32 %v2708, 0.0
        %v2741 = vmax.f32 %v2709, 0.0
        %v2742 = vmax.f32 %v2710, 0.0
        %v2743 = vmax.f32 %v2711, 0.0
        %v2744 = vmax.f32 %v2712, 0.0
        %v2745 = vmax.f32 %v2713, 0.0
        %v2746 = vmax.f32 %v2714, 0.0
        %v2747 = vmax.f32 %v2715, 0.0
        %v2748 = vmax.f32 %v2716, 0.0
        %v2749 = vmax.f32 %v2717, 0.0
        %v2750 = vmax.f32 %v2718, 0.0
        %v2751 = vmax.f32 %v2719, 0.0
        %v2752 = vmax.f32 %v2720, 0.0
        %v2753 = vmax.f32 %v2721, 0.0
        %v2754 = vmax.f32 %v2722, 0.0
        %v2755 = vmax.f32 %v2723, 0.0
        %v2756 = vmax.f32 %v2724, 0.0
        %v2757 = vmax.f32 %v2725, 0.0
        %v2758 = vmax.f32 %v2726, 0.0
        %v2759 = vmax.f32 %v2727, 0.0
        %v2760 = vmax.f32 %v2728, 0.0
        %v2761 = vmax.f32 %v2729, 0.0
        %v2762 = vmax.f32 %v2730, 0.0
        %v2763 = vmax.f32 %v2731, 0.0
        %v2764 = vmax.f32 %v2732, 0.0
        %v2765 = vmax.f32 %v2733, 0.0
        %v2766 = vmax.f32 %v2734, 0.0
        %v2767 = vmax.f32 %v2735, 0.0
        %v2768 = vmax.f32 %v2736, 0.0
        %v2769 = vmax.f32 %v2737, 0.0
        %v2770 = vmax.f32 %v2738, 0.0
        %v2771 = vmax.f32 %v2739, 0.0
        %2772 = vst [vmem:[%s271] sm:$0xff] %v2740
        %2773 = vst [vmem:[%s271 + $0x8] sm:$0xff] %v2741
        %2774 = vst [vmem:[%s271 + $0x10] sm:$0xff] %v2742
        %2775 = vst [vmem:[%s271 + $0x18] sm:$0xff] %v2743
        %2776 = vst [vmem:[%s271 + $0x20] sm:$0xff] %v2744
        %2777 = vst [vmem:[%s271 + $0x28] sm:$0xff] %v2745
        %2778 = vst [vmem:[%s271 + $0x30] sm:$0xff] %v2746
        %2779 = vst [vmem:[%s271 + $0x38] sm:$0xff] %v2747
        %2780 = vst [vmem:[%s271 + $0x40] sm:$0xff] %v2748
        %2781 = vst [vmem:[%s271 + $0x48] sm:$0xff] %v2749
        %2782 = vst [vmem:[%s271 + $0x50] sm:$0xff] %v2750
        %2783 = vst [vmem:[%s271 + $0x58] sm:$0xff] %v2751
        %2784 = vst [vmem:[%s271 + $0x60] sm:$0xff] %v2752
        %2785 = vst [vmem:[%s271 + $0x68] sm:$0xff] %v2753
        %2786 = vst [vmem:[%s271 + $0x70] sm:$0xff] %v2754
        %2787 = vst [vmem:[%s271 + $0x78] sm:$0xff] %v2755
        %2788 = vst [vmem:[%s271 + $0x80] sm:$0xff] %v2756
        %2789 = vst [vmem:[%s271 + $0x88] sm:$0xff] %v2757
        %2790 = vst [vmem:[%s271 + $0x90] sm:$0xff] %v2758
        %2791 = vst [vmem:[%s271 + $0x98] sm:$0xff] %v2759
        %2792 = vst [vmem:[%s271 + $0xa0] sm:$0xff] %v2760
        %2793 = vst [vmem:[%s271 + $0xa8] sm:$0xff] %v2761
        %2794 = vst [vmem:[%s271 + $0xb0] sm:$0xff] %v2762
        %2795 = vst [vmem:[%s271 + $0xb8] sm:$0xff] %v2763
        %2796 = vst [vmem:[%s271 + $0xc0] sm:$0xff] %v2764
        %2797 = vst [vmem:[%s271 + $0xc8] sm:$0xff] %v2765
        %2798 = vst [vmem:[%s271 + $0xd0] sm:$0xff] %v2766
        %2799 = vst [vmem:[%s271 + $0xd8] sm:$0xff] %v2767
        %2800 = vst [vmem:[%s271 + $0xe0] sm:$0xff] %v2768
        %2801 = vst [vmem:[%s271 + $0xe8] sm:$0xff] %v2769
        %2802 = vst [vmem:[%s271 + $0xf0] sm:$0xff] %v2770
        %2803 = vst [vmem:[%s271 + $0xf8] sm:$0xff] %v2771
        %s2804 = sand.u32 %s181, 1
        %s2805 = scalar_lea.sflag [#allocation5], %s2804
        %s2806 = sand.u32 %s181, 1
        %s2807 = smul.addr %s2806, 256
        %s2808 = scalar_lea.vmem [#allocation4], %s2807
        // Predicated region
        $region49: #{tpu_custom_call.1} parent=47 // pred_check
          %p2809 = pneg %p191
        $region50: #{tpu_custom_call.1} parent=47 // pred_check_branch
          %2811 = sbr.rel (%p2809) target = $region52
        $region51: #{tpu_custom_call.1} parent=47 // pred_region
          %s2813 = ssub.s32 4096, 4096
          %2814 = vsyncadd %s2805, %s2813
          %s2815 = smul.addr %s21, 32
          %s2816 = smul.addr %s2815, 128
          %s2817 = scalar_lea.hbm %s7, %s2816
          %s2818 = sshll.u32 %s2808, 4
          %s2819 = int_to_ptr.vmem [resolvable:$true] %s2818
          %2824 = dma.vmem_to_hbm [thread:$0]  %s2819, 4096, %s2817, %s2805, 128, 128, 8
        $region52: #{tpu_custom_call.1} parent=47 // pred_fallthru
          _
      $region48: #{tpu_custom_call.1} parent=5 // pred_fallthru
        _
      %p2825 = scmp.le.s32.totalorder 2, %s16
      // Predicated region
      $region53: #{tpu_custom_call.1} parent=5 // pred_check
        %p2826 = pneg %p2825
      $region54: #{tpu_custom_call.1} parent=5 // pred_check_branch
        %2828 = sbr.rel (%p2826) target = $region56
      $region55: #{tpu_custom_call.1} parent=5 // pred_region
        %s2829 = ssub.s32 %s16, 2
        // Predicated region
        $region57: #{tpu_custom_call.1} parent=55 // pred_check
          %p2830 = pneg %p197
        $region58: #{tpu_custom_call.1} parent=55 // pred_check_branch
          %2832 = sbr.rel (%p2830) target = $region60
        $region59: #{tpu_custom_call.1} parent=55 // pred_region
          %s2833 = sand.u32 %s182, 1
          %s2834 = scalar_lea.sflag [#allocation5], %s2833
          %s2835 = sand.u32 %s182, 1
          %s2836 = smul.addr %s2835, 256
          %s2837 = scalar_lea.vmem [#allocation4], %s2836
          %2838 = dma.done %s2834, 4096
        $region60: #{tpu_custom_call.1} parent=55 // pred_fallthru
          _
      $region56: #{tpu_custom_call.1} parent=5 // pred_fallthru
        _
    $region6: #{tpu_custom_call.1} parent=1 // loop_footer
      %s20 = sadd.s32 1, %s16
    $region7: #{tpu_custom_call.1} parent=1 // loop_footer_branch
      %15 = sbr.rel target = $region3
    $region8: #{tpu_custom_call.1} parent=1 // loop_exit
      _
    %2839 = vsyncpa [#allocation5], 1
    %s2840 = scalar_lea.sflag [#allocation5], 1
    %2841 = vsyncpa %s2840, 1

</llo_original>
